<compile_context>
chip_gen: v5e
topology: v5e:2x2
jax: 0.10.0
libtpu: 0.0.40
codegen_flags: <defaults>
</compile_context>

<pallas_src>
import jax
import jax.numpy as jnp
from jax.experimental import pallas as pl
from jax.experimental.pallas import tpu as pltpu

HID = 10      # hidden width of both hidden layers
SUB = 8       # f32 sublanes per batch tile


def _sigmoid(z):
    # exp and reciprocal both run on the EUP slot (leaves VALU slots free).
    return pl.reciprocal(1.0 + jnp.exp(-z), approx=True)


def ffnn_kernel(x_ref, w1_ref, b1_ref, w2_ref, b2_ref, w3_ref, b3_ref, o_ref):
    # x_ref / o_ref: (SUB, LANE) tile of the flattened batch (lane-dense).
    # w*/b* refs: small SMEM arrays, read as scalars and broadcast by the VPU.
    x = x_ref[...]                                            # (SUB, LANE) f32

    # Layer 1: Linear(1, 10) + Sigmoid  -> 10 broadcast FMAs.
    h1 = [_sigmoid(w1_ref[j] * x + b1_ref[j]) for j in range(HID)]

    # Layer 2: Linear(10, 10) + Sigmoid -> 100 unrolled broadcast FMAs.
    h2 = []
    for o in range(HID):
        acc = b2_ref[o] + w2_ref[o, 0] * h1[0]
        for i in range(1, HID):
            acc = acc + w2_ref[o, i] * h1[i]
        h2.append(_sigmoid(acc))

    # Layer 3: Linear(10, 1) -> 10 broadcast FMAs.
    out = b3_ref[0] + w3_ref[0] * h2[0]
    for i in range(1, HID):
        out = out + w3_ref[i] * h2[i]

    o_ref[...] = out.astype(o_ref.dtype)


def ffnn_forward(x, params, *, lane_tile=256):
    """x: (N, 1) float32.  params: torch-layout weights (see init_params)."""
    assert lane_tile % 128 == 0, "lane_tile must be a multiple of 128"
    N, f_in = x.shape
    assert f_in == 1

    per_step = SUB * lane_tile                       # batch elements per grid step
    n_steps = max(1, pl.cdiv(N, per_step))
    n_pad = n_steps * per_step

    # Lane-dense layout: flatten the batch onto (sublanes, lanes), pad with 0s.
    xf = jnp.pad(x.reshape(-1), (0, n_pad - N))
    x2 = xf.reshape(n_pad // lane_tile, lane_tile)   # (n_steps*SUB, lane_tile)

    # Kernel-friendly SMEM views of the torch-layout parameters.
    w1 = params["W1"].reshape(-1)     # (10,)    W1[j, 0]
    b1 = params["b1"]                 # (10,)
    w2 = params["W2"]                 # (10, 10) [out, in]
    b2 = params["b2"]                 # (10,)
    w3 = params["W3"].reshape(-1)     # (10,)    W3[0, i]
    b3 = params["b3"]                 # (1,)

    smem = pl.BlockSpec(memory_space=pltpu.MemorySpace.SMEM)
    tile = lambda: pl.BlockSpec((SUB, lane_tile), lambda i: (i, 0))

    out2 = pl.pallas_call(
        ffnn_kernel,
        out_shape=jax.ShapeDtypeStruct(x2.shape, x.dtype),
        grid=(n_steps,),
        in_specs=[tile(), smem, smem, smem, smem, smem, smem],
        out_specs=tile(),
        compiler_params=pltpu.CompilerParams(
            dimension_semantics=("parallel",),
        ),
        cost_estimate=pl.CostEstimate(
            flops=240 * n_pad,           # 2*(10 + 100 + 10) MACs per element
            transcendentals=20 * n_pad,  # exp + reciprocal per hidden unit
            bytes_accessed=8 * n_pad,    # 4B in + 4B out per element
        ),
    )(x2, w1, b1, w2, b2, w3, b3)

    return out2.reshape(-1)[:N].reshape(N, 1)


def init_params(key):
    """PyTorch nn.Linear-style init & layout: W is (out, in), b is (out,)."""
    ks = jax.random.split(key, 6)

    def linear(kw, kb, fan_in, fan_out):
        bound = 1.0 / (fan_in ** 0.5)
        w = jax.random.uniform(kw, (fan_out, fan_in), jnp.float32, -bound, bound)
        b = jax.random.uniform(kb, (fan_out,), jnp.float32, -bound, bound)
        return w, b

    W1, b1 = linear(ks[0], ks[1], 1, HID)
    W2, b2 = linear(ks[2], ks[3], HID, HID)
    W3, b3 = linear(ks[4], ks[5], HID, 1)
    return {"W1": W1, "b1": b1, "W2": W2, "b2": b2, "W3": W3, "b3": b3}


def ffnn_ref(x, p):
    """Pure-JAX reference matching torch semantics (y = x @ W.T + b)."""
    h1 = jax.nn.sigmoid(x @ p["W1"].T + p["b1"])
    h2 = jax.nn.sigmoid(h1 @ p["W2"].T + p["b2"])
    return h2 @ p["W3"].T + p["b3"]


if __name__ == "__main__":
    key = jax.random.PRNGKey(0)
    k_param, k_x = jax.random.split(key)

    params = init_params(k_param)
    x = jax.random.normal(k_x, (16, 1), jnp.float32)   # batch=16, in_features=1

    out = jax.block_until_ready(ffnn_forward(x, params))
    ref = ffnn_ref(x, params)

    assert out.shape == (16, 1)
    # approx reciprocal in the in-kernel sigmoid -> a few e-4 abs error budget
    assert jnp.allclose(out, ref, atol=5e-3, rtol=0.0), "mismatch vs reference"

    print("KERNEL_OK")
</pallas_src>

<mosaic_0001>
module attributes {stable_mosaic.version = 11 : i64} {
  func.func @ffnn_kernel(%arg0: i32, %arg1: memref<8x256xf32, #tpu.memory_space<vmem>>, %arg2: memref<10xf32, #tpu.memory_space<smem>>, %arg3: memref<10xf32, #tpu.memory_space<smem>>, %arg4: memref<10x10xf32, #tpu.memory_space<smem>>, %arg5: memref<10xf32, #tpu.memory_space<smem>>, %arg6: memref<10xf32, #tpu.memory_space<smem>>, %arg7: memref<1xf32, #tpu.memory_space<smem>>, %arg8: memref<8x256xf32, #tpu.memory_space<vmem>>) attributes {dimension_semantics = [#tpu.dimension_semantics<parallel>], iteration_bounds = array<i64: 1>, scalar_prefetch = 0 : i64, scratch_operands = 0 : i64, tpu.core_type = #tpu.core_type<tc>, window_params = [{transform_indices = @transform_0, window_bounds = array<i64: 8, 256>}, {transform_indices = @transform_1, window_bounds = array<i64: 10>}, {transform_indices = @transform_2, window_bounds = array<i64: 10>}, {transform_indices = @transform_3, window_bounds = array<i64: 10, 10>}, {transform_indices = @transform_4, window_bounds = array<i64: 10>}, {transform_indices = @transform_5, window_bounds = array<i64: 10>}, {transform_indices = @transform_6, window_bounds = array<i64: 1>}, {transform_indices = @transform_7, window_bounds = array<i64: 8, 256>}]} {
    %c0 = arith.constant 0 : index
    %c0_0 = arith.constant 0 : index
    %0 = vector.load %arg1[%c0, %c0_0] : memref<8x256xf32, #tpu.memory_space<vmem>>, vector<8x256xf32>
    %c0_1 = arith.constant 0 : index
    %1 = memref.load %arg2[%c0_1] : memref<10xf32, #tpu.memory_space<smem>>
    %2 = vector.broadcast %1 : f32 to vector<8x256xf32>
    %3 = arith.mulf %2, %0 : vector<8x256xf32>
    %c0_2 = arith.constant 0 : index
    %4 = memref.load %arg3[%c0_2] : memref<10xf32, #tpu.memory_space<smem>>
    %5 = vector.broadcast %4 : f32 to vector<8x256xf32>
    %6 = arith.addf %3, %5 : vector<8x256xf32>
    %cst = arith.constant 0.000000e+00 : f32
    %7 = vector.broadcast %cst : f32 to vector<8x256xf32>
    %8 = arith.subf %7, %6 : vector<8x256xf32>
    %9 = math.exp %8 : vector<8x256xf32>
    %cst_3 = arith.constant 1.000000e+00 : f32
    %10 = vector.broadcast %cst_3 : f32 to vector<8x256xf32>
    %11 = arith.addf %10, %9 : vector<8x256xf32>
    %12 = tpu.reciprocal %11 {approx = true} : vector<8x256xf32> -> vector<8x256xf32>
    %c1 = arith.constant 1 : index
    %13 = memref.load %arg2[%c1] : memref<10xf32, #tpu.memory_space<smem>>
    %14 = vector.broadcast %13 : f32 to vector<8x256xf32>
    %15 = arith.mulf %14, %0 : vector<8x256xf32>
    %c1_4 = arith.constant 1 : index
    %16 = memref.load %arg3[%c1_4] : memref<10xf32, #tpu.memory_space<smem>>
    %17 = vector.broadcast %16 : f32 to vector<8x256xf32>
    %18 = arith.addf %15, %17 : vector<8x256xf32>
    %cst_5 = arith.constant 0.000000e+00 : f32
    %19 = vector.broadcast %cst_5 : f32 to vector<8x256xf32>
    %20 = arith.subf %19, %18 : vector<8x256xf32>
    %21 = math.exp %20 : vector<8x256xf32>
    %cst_6 = arith.constant 1.000000e+00 : f32
    %22 = vector.broadcast %cst_6 : f32 to vector<8x256xf32>
    %23 = arith.addf %22, %21 : vector<8x256xf32>
    %24 = tpu.reciprocal %23 {approx = true} : vector<8x256xf32> -> vector<8x256xf32>
    %c2 = arith.constant 2 : index
    %25 = memref.load %arg2[%c2] : memref<10xf32, #tpu.memory_space<smem>>
    %26 = vector.broadcast %25 : f32 to vector<8x256xf32>
    %27 = arith.mulf %26, %0 : vector<8x256xf32>
    %c2_7 = arith.constant 2 : index
    %28 = memref.load %arg3[%c2_7] : memref<10xf32, #tpu.memory_space<smem>>
    %29 = vector.broadcast %28 : f32 to vector<8x256xf32>
    %30 = arith.addf %27, %29 : vector<8x256xf32>
    %cst_8 = arith.constant 0.000000e+00 : f32
    %31 = vector.broadcast %cst_8 : f32 to vector<8x256xf32>
    %32 = arith.subf %31, %30 : vector<8x256xf32>
    %33 = math.exp %32 : vector<8x256xf32>
    %cst_9 = arith.constant 1.000000e+00 : f32
    %34 = vector.broadcast %cst_9 : f32 to vector<8x256xf32>
    %35 = arith.addf %34, %33 : vector<8x256xf32>
    %36 = tpu.reciprocal %35 {approx = true} : vector<8x256xf32> -> vector<8x256xf32>
    %c3 = arith.constant 3 : index
    %37 = memref.load %arg2[%c3] : memref<10xf32, #tpu.memory_space<smem>>
    %38 = vector.broadcast %37 : f32 to vector<8x256xf32>
    %39 = arith.mulf %38, %0 : vector<8x256xf32>
    %c3_10 = arith.constant 3 : index
    %40 = memref.load %arg3[%c3_10] : memref<10xf32, #tpu.memory_space<smem>>
    %41 = vector.broadcast %40 : f32 to vector<8x256xf32>
    %42 = arith.addf %39, %41 : vector<8x256xf32>
    %cst_11 = arith.constant 0.000000e+00 : f32
    %43 = vector.broadcast %cst_11 : f32 to vector<8x256xf32>
    %44 = arith.subf %43, %42 : vector<8x256xf32>
    %45 = math.exp %44 : vector<8x256xf32>
    %cst_12 = arith.constant 1.000000e+00 : f32
    %46 = vector.broadcast %cst_12 : f32 to vector<8x256xf32>
    %47 = arith.addf %46, %45 : vector<8x256xf32>
    %48 = tpu.reciprocal %47 {approx = true} : vector<8x256xf32> -> vector<8x256xf32>
    %c4 = arith.constant 4 : index
    %49 = memref.load %arg2[%c4] : memref<10xf32, #tpu.memory_space<smem>>
    %50 = vector.broadcast %49 : f32 to vector<8x256xf32>
    %51 = arith.mulf %50, %0 : vector<8x256xf32>
    %c4_13 = arith.constant 4 : index
    %52 = memref.load %arg3[%c4_13] : memref<10xf32, #tpu.memory_space<smem>>
    %53 = vector.broadcast %52 : f32 to vector<8x256xf32>
    %54 = arith.addf %51, %53 : vector<8x256xf32>
    %cst_14 = arith.constant 0.000000e+00 : f32
    %55 = vector.broadcast %cst_14 : f32 to vector<8x256xf32>
    %56 = arith.subf %55, %54 : vector<8x256xf32>
    %57 = math.exp %56 : vector<8x256xf32>
    %cst_15 = arith.constant 1.000000e+00 : f32
    %58 = vector.broadcast %cst_15 : f32 to vector<8x256xf32>
    %59 = arith.addf %58, %57 : vector<8x256xf32>
    %60 = tpu.reciprocal %59 {approx = true} : vector<8x256xf32> -> vector<8x256xf32>
    %c5 = arith.constant 5 : index
    %61 = memref.load %arg2[%c5] : memref<10xf32, #tpu.memory_space<smem>>
    %62 = vector.broadcast %61 : f32 to vector<8x256xf32>
    %63 = arith.mulf %62, %0 : vector<8x256xf32>
    %c5_16 = arith.constant 5 : index
    %64 = memref.load %arg3[%c5_16] : memref<10xf32, #tpu.memory_space<smem>>
    %65 = vector.broadcast %64 : f32 to vector<8x256xf32>
    %66 = arith.addf %63, %65 : vector<8x256xf32>
    %cst_17 = arith.constant 0.000000e+00 : f32
    %67 = vector.broadcast %cst_17 : f32 to vector<8x256xf32>
    %68 = arith.subf %67, %66 : vector<8x256xf32>
    %69 = math.exp %68 : vector<8x256xf32>
    %cst_18 = arith.constant 1.000000e+00 : f32
    %70 = vector.broadcast %cst_18 : f32 to vector<8x256xf32>
    %71 = arith.addf %70, %69 : vector<8x256xf32>
    %72 = tpu.reciprocal %71 {approx = true} : vector<8x256xf32> -> vector<8x256xf32>
    %c6 = arith.constant 6 : index
    %73 = memref.load %arg2[%c6] : memref<10xf32, #tpu.memory_space<smem>>
    %74 = vector.broadcast %73 : f32 to vector<8x256xf32>
    %75 = arith.mulf %74, %0 : vector<8x256xf32>
    %c6_19 = arith.constant 6 : index
    %76 = memref.load %arg3[%c6_19] : memref<10xf32, #tpu.memory_space<smem>>
    %77 = vector.broadcast %76 : f32 to vector<8x256xf32>
    %78 = arith.addf %75, %77 : vector<8x256xf32>
    %cst_20 = arith.constant 0.000000e+00 : f32
    %79 = vector.broadcast %cst_20 : f32 to vector<8x256xf32>
    %80 = arith.subf %79, %78 : vector<8x256xf32>
    %81 = math.exp %80 : vector<8x256xf32>
    %cst_21 = arith.constant 1.000000e+00 : f32
    %82 = vector.broadcast %cst_21 : f32 to vector<8x256xf32>
    %83 = arith.addf %82, %81 : vector<8x256xf32>
    %84 = tpu.reciprocal %83 {approx = true} : vector<8x256xf32> -> vector<8x256xf32>
    %c7 = arith.constant 7 : index
    %85 = memref.load %arg2[%c7] : memref<10xf32, #tpu.memory_space<smem>>
    %86 = vector.broadcast %85 : f32 to vector<8x256xf32>
    %87 = arith.mulf %86, %0 : vector<8x256xf32>
    %c7_22 = arith.constant 7 : index
    %88 = memref.load %arg3[%c7_22] : memref<10xf32, #tpu.memory_space<smem>>
    %89 = vector.broadcast %88 : f32 to vector<8x256xf32>
    %90 = arith.addf %87, %89 : vector<8x256xf32>
    %cst_23 = arith.constant 0.000000e+00 : f32
    %91 = vector.broadcast %cst_23 : f32 to vector<8x256xf32>
    %92 = arith.subf %91, %90 : vector<8x256xf32>
    %93 = math.exp %92 : vector<8x256xf32>
    %cst_24 = arith.constant 1.000000e+00 : f32
    %94 = vector.broadcast %cst_24 : f32 to vector<8x256xf32>
    %95 = arith.addf %94, %93 : vector<8x256xf32>
    %96 = tpu.reciprocal %95 {approx = true} : vector<8x256xf32> -> vector<8x256xf32>
    %c8 = arith.constant 8 : index
    %97 = memref.load %arg2[%c8] : memref<10xf32, #tpu.memory_space<smem>>
    %98 = vector.broadcast %97 : f32 to vector<8x256xf32>
    %99 = arith.mulf %98, %0 : vector<8x256xf32>
    %c8_25 = arith.constant 8 : index
    %100 = memref.load %arg3[%c8_25] : memref<10xf32, #tpu.memory_space<smem>>
    %101 = vector.broadcast %100 : f32 to vector<8x256xf32>
    %102 = arith.addf %99, %101 : vector<8x256xf32>
    %cst_26 = arith.constant 0.000000e+00 : f32
    %103 = vector.broadcast %cst_26 : f32 to vector<8x256xf32>
    %104 = arith.subf %103, %102 : vector<8x256xf32>
    %105 = math.exp %104 : vector<8x256xf32>
    %cst_27 = arith.constant 1.000000e+00 : f32
    %106 = vector.broadcast %cst_27 : f32 to vector<8x256xf32>
    %107 = arith.addf %106, %105 : vector<8x256xf32>
    %108 = tpu.reciprocal %107 {approx = true} : vector<8x256xf32> -> vector<8x256xf32>
    %c9 = arith.constant 9 : index
    %109 = memref.load %arg2[%c9] : memref<10xf32, #tpu.memory_space<smem>>
    %110 = vector.broadcast %109 : f32 to vector<8x256xf32>
    %111 = arith.mulf %110, %0 : vector<8x256xf32>
    %c9_28 = arith.constant 9 : index
    %112 = memref.load %arg3[%c9_28] : memref<10xf32, #tpu.memory_space<smem>>
    %113 = vector.broadcast %112 : f32 to vector<8x256xf32>
    %114 = arith.addf %111, %113 : vector<8x256xf32>
    %cst_29 = arith.constant 0.000000e+00 : f32
    %115 = vector.broadcast %cst_29 : f32 to vector<8x256xf32>
    %116 = arith.subf %115, %114 : vector<8x256xf32>
    %117 = math.exp %116 : vector<8x256xf32>
    %cst_30 = arith.constant 1.000000e+00 : f32
    %118 = vector.broadcast %cst_30 : f32 to vector<8x256xf32>
    %119 = arith.addf %118, %117 : vector<8x256xf32>
    %120 = tpu.reciprocal %119 {approx = true} : vector<8x256xf32> -> vector<8x256xf32>
    %c0_31 = arith.constant 0 : index
    %121 = memref.load %arg5[%c0_31] : memref<10xf32, #tpu.memory_space<smem>>
    %c0_32 = arith.constant 0 : index
    %c0_33 = arith.constant 0 : index
    %122 = memref.load %arg4[%c0_32, %c0_33] : memref<10x10xf32, #tpu.memory_space<smem>>
    %123 = vector.broadcast %122 : f32 to vector<8x256xf32>
    %124 = arith.mulf %123, %12 : vector<8x256xf32>
    %125 = vector.broadcast %121 : f32 to vector<8x256xf32>
    %126 = arith.addf %125, %124 : vector<8x256xf32>
    %c0_34 = arith.constant 0 : index
    %c1_35 = arith.constant 1 : index
    %127 = memref.load %arg4[%c0_34, %c1_35] : memref<10x10xf32, #tpu.memory_space<smem>>
    %128 = vector.broadcast %127 : f32 to vector<8x256xf32>
    %129 = arith.mulf %128, %24 : vector<8x256xf32>
    %130 = arith.addf %126, %129 : vector<8x256xf32>
    %c0_36 = arith.constant 0 : index
    %c2_37 = arith.constant 2 : index
    %131 = memref.load %arg4[%c0_36, %c2_37] : memref<10x10xf32, #tpu.memory_space<smem>>
    %132 = vector.broadcast %131 : f32 to vector<8x256xf32>
    %133 = arith.mulf %132, %36 : vector<8x256xf32>
    %134 = arith.addf %130, %133 : vector<8x256xf32>
    %c0_38 = arith.constant 0 : index
    %c3_39 = arith.constant 3 : index
    %135 = memref.load %arg4[%c0_38, %c3_39] : memref<10x10xf32, #tpu.memory_space<smem>>
    %136 = vector.broadcast %135 : f32 to vector<8x256xf32>
    %137 = arith.mulf %136, %48 : vector<8x256xf32>
    %138 = arith.addf %134, %137 : vector<8x256xf32>
    %c0_40 = arith.constant 0 : index
    %c4_41 = arith.constant 4 : index
    %139 = memref.load %arg4[%c0_40, %c4_41] : memref<10x10xf32, #tpu.memory_space<smem>>
    %140 = vector.broadcast %139 : f32 to vector<8x256xf32>
    %141 = arith.mulf %140, %60 : vector<8x256xf32>
    %142 = arith.addf %138, %141 : vector<8x256xf32>
    %c0_42 = arith.constant 0 : index
    %c5_43 = arith.constant 5 : index
    %143 = memref.load %arg4[%c0_42, %c5_43] : memref<10x10xf32, #tpu.memory_space<smem>>
    %144 = vector.broadcast %143 : f32 to vector<8x256xf32>
    %145 = arith.mulf %144, %72 : vector<8x256xf32>
    %146 = arith.addf %142, %145 : vector<8x256xf32>
    %c0_44 = arith.constant 0 : index
    %c6_45 = arith.constant 6 : index
    %147 = memref.load %arg4[%c0_44, %c6_45] : memref<10x10xf32, #tpu.memory_space<smem>>
    %148 = vector.broadcast %147 : f32 to vector<8x256xf32>
    %149 = arith.mulf %148, %84 : vector<8x256xf32>
    %150 = arith.addf %146, %149 : vector<8x256xf32>
    %c0_46 = arith.constant 0 : index
    %c7_47 = arith.constant 7 : index
    %151 = memref.load %arg4[%c0_46, %c7_47] : memref<10x10xf32, #tpu.memory_space<smem>>
    %152 = vector.broadcast %151 : f32 to vector<8x256xf32>
    %153 = arith.mulf %152, %96 : vector<8x256xf32>
    %154 = arith.addf %150, %153 : vector<8x256xf32>
    %c0_48 = arith.constant 0 : index
    %c8_49 = arith.constant 8 : index
    %155 = memref.load %arg4[%c0_48, %c8_49] : memref<10x10xf32, #tpu.memory_space<smem>>
    %156 = vector.broadcast %155 : f32 to vector<8x256xf32>
    %157 = arith.mulf %156, %108 : vector<8x256xf32>
    %158 = arith.addf %154, %157 : vector<8x256xf32>
    %c0_50 = arith.constant 0 : index
    %c9_51 = arith.constant 9 : index
    %159 = memref.load %arg4[%c0_50, %c9_51] : memref<10x10xf32, #tpu.memory_space<smem>>
    %160 = vector.broadcast %159 : f32 to vector<8x256xf32>
    %161 = arith.mulf %160, %120 : vector<8x256xf32>
    %162 = arith.addf %158, %161 : vector<8x256xf32>
    %cst_52 = arith.constant 0.000000e+00 : f32
    %163 = vector.broadcast %cst_52 : f32 to vector<8x256xf32>
    %164 = arith.subf %163, %162 : vector<8x256xf32>
    %165 = math.exp %164 : vector<8x256xf32>
    %cst_53 = arith.constant 1.000000e+00 : f32
    %166 = vector.broadcast %cst_53 : f32 to vector<8x256xf32>
    %167 = arith.addf %166, %165 : vector<8x256xf32>
    %168 = tpu.reciprocal %167 {approx = true} : vector<8x256xf32> -> vector<8x256xf32>
    %c1_54 = arith.constant 1 : index
    %169 = memref.load %arg5[%c1_54] : memref<10xf32, #tpu.memory_space<smem>>
    %c1_55 = arith.constant 1 : index
    %c0_56 = arith.constant 0 : index
    %170 = memref.load %arg4[%c1_55, %c0_56] : memref<10x10xf32, #tpu.memory_space<smem>>
    %171 = vector.broadcast %170 : f32 to vector<8x256xf32>
    %172 = arith.mulf %171, %12 : vector<8x256xf32>
    %173 = vector.broadcast %169 : f32 to vector<8x256xf32>
    %174 = arith.addf %173, %172 : vector<8x256xf32>
    %c1_57 = arith.constant 1 : index
    %c1_58 = arith.constant 1 : index
    %175 = memref.load %arg4[%c1_57, %c1_58] : memref<10x10xf32, #tpu.memory_space<smem>>
    %176 = vector.broadcast %175 : f32 to vector<8x256xf32>
    %177 = arith.mulf %176, %24 : vector<8x256xf32>
    %178 = arith.addf %174, %177 : vector<8x256xf32>
    %c1_59 = arith.constant 1 : index
    %c2_60 = arith.constant 2 : index
    %179 = memref.load %arg4[%c1_59, %c2_60] : memref<10x10xf32, #tpu.memory_space<smem>>
    %180 = vector.broadcast %179 : f32 to vector<8x256xf32>
    %181 = arith.mulf %180, %36 : vector<8x256xf32>
    %182 = arith.addf %178, %181 : vector<8x256xf32>
    %c1_61 = arith.constant 1 : index
    %c3_62 = arith.constant 3 : index
    %183 = memref.load %arg4[%c1_61, %c3_62] : memref<10x10xf32, #tpu.memory_space<smem>>
    %184 = vector.broadcast %183 : f32 to vector<8x256xf32>
    %185 = arith.mulf %184, %48 : vector<8x256xf32>
    %186 = arith.addf %182, %185 : vector<8x256xf32>
    %c1_63 = arith.constant 1 : index
    %c4_64 = arith.constant 4 : index
    %187 = memref.load %arg4[%c1_63, %c4_64] : memref<10x10xf32, #tpu.memory_space<smem>>
    %188 = vector.broadcast %187 : f32 to vector<8x256xf32>
    %189 = arith.mulf %188, %60 : vector<8x256xf32>
    %190 = arith.addf %186, %189 : vector<8x256xf32>
    %c1_65 = arith.constant 1 : index
    %c5_66 = arith.constant 5 : index
    %191 = memref.load %arg4[%c1_65, %c5_66] : memref<10x10xf32, #tpu.memory_space<smem>>
    %192 = vector.broadcast %191 : f32 to vector<8x256xf32>
    %193 = arith.mulf %192, %72 : vector<8x256xf32>
    %194 = arith.addf %190, %193 : vector<8x256xf32>
    %c1_67 = arith.constant 1 : index
    %c6_68 = arith.constant 6 : index
    %195 = memref.load %arg4[%c1_67, %c6_68] : memref<10x10xf32, #tpu.memory_space<smem>>
    %196 = vector.broadcast %195 : f32 to vector<8x256xf32>
    %197 = arith.mulf %196, %84 : vector<8x256xf32>
    %198 = arith.addf %194, %197 : vector<8x256xf32>
    %c1_69 = arith.constant 1 : index
    %c7_70 = arith.constant 7 : index
    %199 = memref.load %arg4[%c1_69, %c7_70] : memref<10x10xf32, #tpu.memory_space<smem>>
    %200 = vector.broadcast %199 : f32 to vector<8x256xf32>
    %201 = arith.mulf %200, %96 : vector<8x256xf32>
    %202 = arith.addf %198, %201 : vector<8x256xf32>
    %c1_71 = arith.constant 1 : index
    %c8_72 = arith.constant 8 : index
    %203 = memref.load %arg4[%c1_71, %c8_72] : memref<10x10xf32, #tpu.memory_space<smem>>
    %204 = vector.broadcast %203 : f32 to vector<8x256xf32>
    %205 = arith.mulf %204, %108 : vector<8x256xf32>
    %206 = arith.addf %202, %205 : vector<8x256xf32>
    %c1_73 = arith.constant 1 : index
    %c9_74 = arith.constant 9 : index
    %207 = memref.load %arg4[%c1_73, %c9_74] : memref<10x10xf32, #tpu.memory_space<smem>>
    %208 = vector.broadcast %207 : f32 to vector<8x256xf32>
    %209 = arith.mulf %208, %120 : vector<8x256xf32>
    %210 = arith.addf %206, %209 : vector<8x256xf32>
    %cst_75 = arith.constant 0.000000e+00 : f32
    %211 = vector.broadcast %cst_75 : f32 to vector<8x256xf32>
    %212 = arith.subf %211, %210 : vector<8x256xf32>
    %213 = math.exp %212 : vector<8x256xf32>
    %cst_76 = arith.constant 1.000000e+00 : f32
    %214 = vector.broadcast %cst_76 : f32 to vector<8x256xf32>
    %215 = arith.addf %214, %213 : vector<8x256xf32>
    %216 = tpu.reciprocal %215 {approx = true} : vector<8x256xf32> -> vector<8x256xf32>
    %c2_77 = arith.constant 2 : index
    %217 = memref.load %arg5[%c2_77] : memref<10xf32, #tpu.memory_space<smem>>
    %c2_78 = arith.constant 2 : index
    %c0_79 = arith.constant 0 : index
    %218 = memref.load %arg4[%c2_78, %c0_79] : memref<10x10xf32, #tpu.memory_space<smem>>
    %219 = vector.broadcast %218 : f32 to vector<8x256xf32>
    %220 = arith.mulf %219, %12 : vector<8x256xf32>
    %221 = vector.broadcast %217 : f32 to vector<8x256xf32>
    %222 = arith.addf %221, %220 : vector<8x256xf32>
    %c2_80 = arith.constant 2 : index
    %c1_81 = arith.constant 1 : index
    %223 = memref.load %arg4[%c2_80, %c1_81] : memref<10x10xf32, #tpu.memory_space<smem>>
    %224 = vector.broadcast %223 : f32 to vector<8x256xf32>
    %225 = arith.mulf %224, %24 : vector<8x256xf32>
    %226 = arith.addf %222, %225 : vector<8x256xf32>
    %c2_82 = arith.constant 2 : index
    %c2_83 = arith.constant 2 : index
    %227 = memref.load %arg4[%c2_82, %c2_83] : memref<10x10xf32, #tpu.memory_space<smem>>
    %228 = vector.broadcast %227 : f32 to vector<8x256xf32>
    %229 = arith.mulf %228, %36 : vector<8x256xf32>
    %230 = arith.addf %226, %229 : vector<8x256xf32>
    %c2_84 = arith.constant 2 : index
    %c3_85 = arith.constant 3 : index
    %231 = memref.load %arg4[%c2_84, %c3_85] : memref<10x10xf32, #tpu.memory_space<smem>>
    %232 = vector.broadcast %231 : f32 to vector<8x256xf32>
    %233 = arith.mulf %232, %48 : vector<8x256xf32>
    %234 = arith.addf %230, %233 : vector<8x256xf32>
    %c2_86 = arith.constant 2 : index
    %c4_87 = arith.constant 4 : index
    %235 = memref.load %arg4[%c2_86, %c4_87] : memref<10x10xf32, #tpu.memory_space<smem>>
    %236 = vector.broadcast %235 : f32 to vector<8x256xf32>
    %237 = arith.mulf %236, %60 : vector<8x256xf32>
    %238 = arith.addf %234, %237 : vector<8x256xf32>
    %c2_88 = arith.constant 2 : index
    %c5_89 = arith.constant 5 : index
    %239 = memref.load %arg4[%c2_88, %c5_89] : memref<10x10xf32, #tpu.memory_space<smem>>
    %240 = vector.broadcast %239 : f32 to vector<8x256xf32>
    %241 = arith.mulf %240, %72 : vector<8x256xf32>
    %242 = arith.addf %238, %241 : vector<8x256xf32>
    %c2_90 = arith.constant 2 : index
    %c6_91 = arith.constant 6 : index
    %243 = memref.load %arg4[%c2_90, %c6_91] : memref<10x10xf32, #tpu.memory_space<smem>>
    %244 = vector.broadcast %243 : f32 to vector<8x256xf32>
    %245 = arith.mulf %244, %84 : vector<8x256xf32>
    %246 = arith.addf %242, %245 : vector<8x256xf32>
    %c2_92 = arith.constant 2 : index
    %c7_93 = arith.constant 7 : index
    %247 = memref.load %arg4[%c2_92, %c7_93] : memref<10x10xf32, #tpu.memory_space<smem>>
    %248 = vector.broadcast %247 : f32 to vector<8x256xf32>
    %249 = arith.mulf %248, %96 : vector<8x256xf32>
    %250 = arith.addf %246, %249 : vector<8x256xf32>
    %c2_94 = arith.constant 2 : index
    %c8_95 = arith.constant 8 : index
    %251 = memref.load %arg4[%c2_94, %c8_95] : memref<10x10xf32, #tpu.memory_space<smem>>
    %252 = vector.broadcast %251 : f32 to vector<8x256xf32>
    %253 = arith.mulf %252, %108 : vector<8x256xf32>
    %254 = arith.addf %250, %253 : vector<8x256xf32>
    %c2_96 = arith.constant 2 : index
    %c9_97 = arith.constant 9 : index
    %255 = memref.load %arg4[%c2_96, %c9_97] : memref<10x10xf32, #tpu.memory_space<smem>>
    %256 = vector.broadcast %255 : f32 to vector<8x256xf32>
    %257 = arith.mulf %256, %120 : vector<8x256xf32>
    %258 = arith.addf %254, %257 : vector<8x256xf32>
    %cst_98 = arith.constant 0.000000e+00 : f32
    %259 = vector.broadcast %cst_98 : f32 to vector<8x256xf32>
    %260 = arith.subf %259, %258 : vector<8x256xf32>
    %261 = math.exp %260 : vector<8x256xf32>
    %cst_99 = arith.constant 1.000000e+00 : f32
    %262 = vector.broadcast %cst_99 : f32 to vector<8x256xf32>
    %263 = arith.addf %262, %261 : vector<8x256xf32>
    %264 = tpu.reciprocal %263 {approx = true} : vector<8x256xf32> -> vector<8x256xf32>
    %c3_100 = arith.constant 3 : index
    %265 = memref.load %arg5[%c3_100] : memref<10xf32, #tpu.memory_space<smem>>
    %c3_101 = arith.constant 3 : index
    %c0_102 = arith.constant 0 : index
    %266 = memref.load %arg4[%c3_101, %c0_102] : memref<10x10xf32, #tpu.memory_space<smem>>
    %267 = vector.broadcast %266 : f32 to vector<8x256xf32>
    %268 = arith.mulf %267, %12 : vector<8x256xf32>
    %269 = vector.broadcast %265 : f32 to vector<8x256xf32>
    %270 = arith.addf %269, %268 : vector<8x256xf32>
    %c3_103 = arith.constant 3 : index
    %c1_104 = arith.constant 1 : index
    %271 = memref.load %arg4[%c3_103, %c1_104] : memref<10x10xf32, #tpu.memory_space<smem>>
    %272 = vector.broadcast %271 : f32 to vector<8x256xf32>
    %273 = arith.mulf %272, %24 : vector<8x256xf32>
    %274 = arith.addf %270, %273 : vector<8x256xf32>
    %c3_105 = arith.constant 3 : index
    %c2_106 = arith.constant 2 : index
    %275 = memref.load %arg4[%c3_105, %c2_106] : memref<10x10xf32, #tpu.memory_space<smem>>
    %276 = vector.broadcast %275 : f32 to vector<8x256xf32>
    %277 = arith.mulf %276, %36 : vector<8x256xf32>
    %278 = arith.addf %274, %277 : vector<8x256xf32>
    %c3_107 = arith.constant 3 : index
    %c3_108 = arith.constant 3 : index
    %279 = memref.load %arg4[%c3_107, %c3_108] : memref<10x10xf32, #tpu.memory_space<smem>>
    %280 = vector.broadcast %279 : f32 to vector<8x256xf32>
    %281 = arith.mulf %280, %48 : vector<8x256xf32>
    %282 = arith.addf %278, %281 : vector<8x256xf32>
    %c3_109 = arith.constant 3 : index
    %c4_110 = arith.constant 4 : index
    %283 = memref.load %arg4[%c3_109, %c4_110] : memref<10x10xf32, #tpu.memory_space<smem>>
    %284 = vector.broadcast %283 : f32 to vector<8x256xf32>
    %285 = arith.mulf %284, %60 : vector<8x256xf32>
    %286 = arith.addf %282, %285 : vector<8x256xf32>
    %c3_111 = arith.constant 3 : index
    %c5_112 = arith.constant 5 : index
    %287 = memref.load %arg4[%c3_111, %c5_112] : memref<10x10xf32, #tpu.memory_space<smem>>
    %288 = vector.broadcast %287 : f32 to vector<8x256xf32>
    %289 = arith.mulf %288, %72 : vector<8x256xf32>
    %290 = arith.addf %286, %289 : vector<8x256xf32>
    %c3_113 = arith.constant 3 : index
    %c6_114 = arith.constant 6 : index
    %291 = memref.load %arg4[%c3_113, %c6_114] : memref<10x10xf32, #tpu.memory_space<smem>>
    %292 = vector.broadcast %291 : f32 to vector<8x256xf32>
    %293 = arith.mulf %292, %84 : vector<8x256xf32>
    %294 = arith.addf %290, %293 : vector<8x256xf32>
    %c3_115 = arith.constant 3 : index
    %c7_116 = arith.constant 7 : index
    %295 = memref.load %arg4[%c3_115, %c7_116] : memref<10x10xf32, #tpu.memory_space<smem>>
    %296 = vector.broadcast %295 : f32 to vector<8x256xf32>
    %297 = arith.mulf %296, %96 : vector<8x256xf32>
    %298 = arith.addf %294, %297 : vector<8x256xf32>
    %c3_117 = arith.constant 3 : index
    %c8_118 = arith.constant 8 : index
    %299 = memref.load %arg4[%c3_117, %c8_118] : memref<10x10xf32, #tpu.memory_space<smem>>
    %300 = vector.broadcast %299 : f32 to vector<8x256xf32>
    %301 = arith.mulf %300, %108 : vector<8x256xf32>
    %302 = arith.addf %298, %301 : vector<8x256xf32>
    %c3_119 = arith.constant 3 : index
    %c9_120 = arith.constant 9 : index
    %303 = memref.load %arg4[%c3_119, %c9_120] : memref<10x10xf32, #tpu.memory_space<smem>>
    %304 = vector.broadcast %303 : f32 to vector<8x256xf32>
    %305 = arith.mulf %304, %120 : vector<8x256xf32>
    %306 = arith.addf %302, %305 : vector<8x256xf32>
    %cst_121 = arith.constant 0.000000e+00 : f32
    %307 = vector.broadcast %cst_121 : f32 to vector<8x256xf32>
    %308 = arith.subf %307, %306 : vector<8x256xf32>
    %309 = math.exp %308 : vector<8x256xf32>
    %cst_122 = arith.constant 1.000000e+00 : f32
    %310 = vector.broadcast %cst_122 : f32 to vector<8x256xf32>
    %311 = arith.addf %310, %309 : vector<8x256xf32>
    %312 = tpu.reciprocal %311 {approx = true} : vector<8x256xf32> -> vector<8x256xf32>
    %c4_123 = arith.constant 4 : index
    %313 = memref.load %arg5[%c4_123] : memref<10xf32, #tpu.memory_space<smem>>
    %c4_124 = arith.constant 4 : index
    %c0_125 = arith.constant 0 : index
    %314 = memref.load %arg4[%c4_124, %c0_125] : memref<10x10xf32, #tpu.memory_space<smem>>
    %315 = vector.broadcast %314 : f32 to vector<8x256xf32>
    %316 = arith.mulf %315, %12 : vector<8x256xf32>
    %317 = vector.broadcast %313 : f32 to vector<8x256xf32>
    %318 = arith.addf %317, %316 : vector<8x256xf32>
    %c4_126 = arith.constant 4 : index
    %c1_127 = arith.constant 1 : index
    %319 = memref.load %arg4[%c4_126, %c1_127] : memref<10x10xf32, #tpu.memory_space<smem>>
    %320 = vector.broadcast %319 : f32 to vector<8x256xf32>
    %321 = arith.mulf %320, %24 : vector<8x256xf32>
    %322 = arith.addf %318, %321 : vector<8x256xf32>
    %c4_128 = arith.constant 4 : index
    %c2_129 = arith.constant 2 : index
    %323 = memref.load %arg4[%c4_128, %c2_129] : memref<10x10xf32, #tpu.memory_space<smem>>
    %324 = vector.broadcast %323 : f32 to vector<8x256xf32>
    %325 = arith.mulf %324, %36 : vector<8x256xf32>
    %326 = arith.addf %322, %325 : vector<8x256xf32>
    %c4_130 = arith.constant 4 : index
    %c3_131 = arith.constant 3 : index
    %327 = memref.load %arg4[%c4_130, %c3_131] : memref<10x10xf32, #tpu.memory_space<smem>>
    %328 = vector.broadcast %327 : f32 to vector<8x256xf32>
    %329 = arith.mulf %328, %48 : vector<8x256xf32>
    %330 = arith.addf %326, %329 : vector<8x256xf32>
    %c4_132 = arith.constant 4 : index
    %c4_133 = arith.constant 4 : index
    %331 = memref.load %arg4[%c4_132, %c4_133] : memref<10x10xf32, #tpu.memory_space<smem>>
    %332 = vector.broadcast %331 : f32 to vector<8x256xf32>
    %333 = arith.mulf %332, %60 : vector<8x256xf32>
    %334 = arith.addf %330, %333 : vector<8x256xf32>
    %c4_134 = arith.constant 4 : index
    %c5_135 = arith.constant 5 : index
    %335 = memref.load %arg4[%c4_134, %c5_135] : memref<10x10xf32, #tpu.memory_space<smem>>
    %336 = vector.broadcast %335 : f32 to vector<8x256xf32>
    %337 = arith.mulf %336, %72 : vector<8x256xf32>
    %338 = arith.addf %334, %337 : vector<8x256xf32>
    %c4_136 = arith.constant 4 : index
    %c6_137 = arith.constant 6 : index
    %339 = memref.load %arg4[%c4_136, %c6_137] : memref<10x10xf32, #tpu.memory_space<smem>>
    %340 = vector.broadcast %339 : f32 to vector<8x256xf32>
    %341 = arith.mulf %340, %84 : vector<8x256xf32>
    %342 = arith.addf %338, %341 : vector<8x256xf32>
    %c4_138 = arith.constant 4 : index
    %c7_139 = arith.constant 7 : index
    %343 = memref.load %arg4[%c4_138, %c7_139] : memref<10x10xf32, #tpu.memory_space<smem>>
    %344 = vector.broadcast %343 : f32 to vector<8x256xf32>
    %345 = arith.mulf %344, %96 : vector<8x256xf32>
    %346 = arith.addf %342, %345 : vector<8x256xf32>
    %c4_140 = arith.constant 4 : index
    %c8_141 = arith.constant 8 : index
    %347 = memref.load %arg4[%c4_140, %c8_141] : memref<10x10xf32, #tpu.memory_space<smem>>
    %348 = vector.broadcast %347 : f32 to vector<8x256xf32>
    %349 = arith.mulf %348, %108 : vector<8x256xf32>
    %350 = arith.addf %346, %349 : vector<8x256xf32>
    %c4_142 = arith.constant 4 : index
    %c9_143 = arith.constant 9 : index
    %351 = memref.load %arg4[%c4_142, %c9_143] : memref<10x10xf32, #tpu.memory_space<smem>>
    %352 = vector.broadcast %351 : f32 to vector<8x256xf32>
    %353 = arith.mulf %352, %120 : vector<8x256xf32>
    %354 = arith.addf %350, %353 : vector<8x256xf32>
    %cst_144 = arith.constant 0.000000e+00 : f32
    %355 = vector.broadcast %cst_144 : f32 to vector<8x256xf32>
    %356 = arith.subf %355, %354 : vector<8x256xf32>
    %357 = math.exp %356 : vector<8x256xf32>
    %cst_145 = arith.constant 1.000000e+00 : f32
    %358 = vector.broadcast %cst_145 : f32 to vector<8x256xf32>
    %359 = arith.addf %358, %357 : vector<8x256xf32>
    %360 = tpu.reciprocal %359 {approx = true} : vector<8x256xf32> -> vector<8x256xf32>
    %c5_146 = arith.constant 5 : index
    %361 = memref.load %arg5[%c5_146] : memref<10xf32, #tpu.memory_space<smem>>
    %c5_147 = arith.constant 5 : index
    %c0_148 = arith.constant 0 : index
    %362 = memref.load %arg4[%c5_147, %c0_148] : memref<10x10xf32, #tpu.memory_space<smem>>
    %363 = vector.broadcast %362 : f32 to vector<8x256xf32>
    %364 = arith.mulf %363, %12 : vector<8x256xf32>
    %365 = vector.broadcast %361 : f32 to vector<8x256xf32>
    %366 = arith.addf %365, %364 : vector<8x256xf32>
    %c5_149 = arith.constant 5 : index
    %c1_150 = arith.constant 1 : index
    %367 = memref.load %arg4[%c5_149, %c1_150] : memref<10x10xf32, #tpu.memory_space<smem>>
    %368 = vector.broadcast %367 : f32 to vector<8x256xf32>
    %369 = arith.mulf %368, %24 : vector<8x256xf32>
    %370 = arith.addf %366, %369 : vector<8x256xf32>
    %c5_151 = arith.constant 5 : index
    %c2_152 = arith.constant 2 : index
    %371 = memref.load %arg4[%c5_151, %c2_152] : memref<10x10xf32, #tpu.memory_space<smem>>
    %372 = vector.broadcast %371 : f32 to vector<8x256xf32>
    %373 = arith.mulf %372, %36 : vector<8x256xf32>
    %374 = arith.addf %370, %373 : vector<8x256xf32>
    %c5_153 = arith.constant 5 : index
    %c3_154 = arith.constant 3 : index
    %375 = memref.load %arg4[%c5_153, %c3_154] : memref<10x10xf32, #tpu.memory_space<smem>>
    %376 = vector.broadcast %375 : f32 to vector<8x256xf32>
    %377 = arith.mulf %376, %48 : vector<8x256xf32>
    %378 = arith.addf %374, %377 : vector<8x256xf32>
    %c5_155 = arith.constant 5 : index
    %c4_156 = arith.constant 4 : index
    %379 = memref.load %arg4[%c5_155, %c4_156] : memref<10x10xf32, #tpu.memory_space<smem>>
    %380 = vector.broadcast %379 : f32 to vector<8x256xf32>
    %381 = arith.mulf %380, %60 : vector<8x256xf32>
    %382 = arith.addf %378, %381 : vector<8x256xf32>
    %c5_157 = arith.constant 5 : index
    %c5_158 = arith.constant 5 : index
    %383 = memref.load %arg4[%c5_157, %c5_158] : memref<10x10xf32, #tpu.memory_space<smem>>
    %384 = vector.broadcast %383 : f32 to vector<8x256xf32>
    %385 = arith.mulf %384, %72 : vector<8x256xf32>
    %386 = arith.addf %382, %385 : vector<8x256xf32>
    %c5_159 = arith.constant 5 : index
    %c6_160 = arith.constant 6 : index
    %387 = memref.load %arg4[%c5_159, %c6_160] : memref<10x10xf32, #tpu.memory_space<smem>>
    %388 = vector.broadcast %387 : f32 to vector<8x256xf32>
    %389 = arith.mulf %388, %84 : vector<8x256xf32>
    %390 = arith.addf %386, %389 : vector<8x256xf32>
    %c5_161 = arith.constant 5 : index
    %c7_162 = arith.constant 7 : index
    %391 = memref.load %arg4[%c5_161, %c7_162] : memref<10x10xf32, #tpu.memory_space<smem>>
    %392 = vector.broadcast %391 : f32 to vector<8x256xf32>
    %393 = arith.mulf %392, %96 : vector<8x256xf32>
    %394 = arith.addf %390, %393 : vector<8x256xf32>
    %c5_163 = arith.constant 5 : index
    %c8_164 = arith.constant 8 : index
    %395 = memref.load %arg4[%c5_163, %c8_164] : memref<10x10xf32, #tpu.memory_space<smem>>
    %396 = vector.broadcast %395 : f32 to vector<8x256xf32>
    %397 = arith.mulf %396, %108 : vector<8x256xf32>
    %398 = arith.addf %394, %397 : vector<8x256xf32>
    %c5_165 = arith.constant 5 : index
    %c9_166 = arith.constant 9 : index
    %399 = memref.load %arg4[%c5_165, %c9_166] : memref<10x10xf32, #tpu.memory_space<smem>>
    %400 = vector.broadcast %399 : f32 to vector<8x256xf32>
    %401 = arith.mulf %400, %120 : vector<8x256xf32>
    %402 = arith.addf %398, %401 : vector<8x256xf32>
    %cst_167 = arith.constant 0.000000e+00 : f32
    %403 = vector.broadcast %cst_167 : f32 to vector<8x256xf32>
    %404 = arith.subf %403, %402 : vector<8x256xf32>
    %405 = math.exp %404 : vector<8x256xf32>
    %cst_168 = arith.constant 1.000000e+00 : f32
    %406 = vector.broadcast %cst_168 : f32 to vector<8x256xf32>
    %407 = arith.addf %406, %405 : vector<8x256xf32>
    %408 = tpu.reciprocal %407 {approx = true} : vector<8x256xf32> -> vector<8x256xf32>
    %c6_169 = arith.constant 6 : index
    %409 = memref.load %arg5[%c6_169] : memref<10xf32, #tpu.memory_space<smem>>
    %c6_170 = arith.constant 6 : index
    %c0_171 = arith.constant 0 : index
    %410 = memref.load %arg4[%c6_170, %c0_171] : memref<10x10xf32, #tpu.memory_space<smem>>
    %411 = vector.broadcast %410 : f32 to vector<8x256xf32>
    %412 = arith.mulf %411, %12 : vector<8x256xf32>
    %413 = vector.broadcast %409 : f32 to vector<8x256xf32>
    %414 = arith.addf %413, %412 : vector<8x256xf32>
    %c6_172 = arith.constant 6 : index
    %c1_173 = arith.constant 1 : index
    %415 = memref.load %arg4[%c6_172, %c1_173] : memref<10x10xf32, #tpu.memory_space<smem>>
    %416 = vector.broadcast %415 : f32 to vector<8x256xf32>
    %417 = arith.mulf %416, %24 : vector<8x256xf32>
    %418 = arith.addf %414, %417 : vector<8x256xf32>
    %c6_174 = arith.constant 6 : index
    %c2_175 = arith.constant 2 : index
    %419 = memref.load %arg4[%c6_174, %c2_175] : memref<10x10xf32, #tpu.memory_space<smem>>
    %420 = vector.broadcast %419 : f32 to vector<8x256xf32>
    %421 = arith.mulf %420, %36 : vector<8x256xf32>
    %422 = arith.addf %418, %421 : vector<8x256xf32>
    %c6_176 = arith.constant 6 : index
    %c3_177 = arith.constant 3 : index
    %423 = memref.load %arg4[%c6_176, %c3_177] : memref<10x10xf32, #tpu.memory_space<smem>>
    %424 = vector.broadcast %423 : f32 to vector<8x256xf32>
    %425 = arith.mulf %424, %48 : vector<8x256xf32>
    %426 = arith.addf %422, %425 : vector<8x256xf32>
    %c6_178 = arith.constant 6 : index
    %c4_179 = arith.constant 4 : index
    %427 = memref.load %arg4[%c6_178, %c4_179] : memref<10x10xf32, #tpu.memory_space<smem>>
    %428 = vector.broadcast %427 : f32 to vector<8x256xf32>
    %429 = arith.mulf %428, %60 : vector<8x256xf32>
    %430 = arith.addf %426, %429 : vector<8x256xf32>
    %c6_180 = arith.constant 6 : index
    %c5_181 = arith.constant 5 : index
    %431 = memref.load %arg4[%c6_180, %c5_181] : memref<10x10xf32, #tpu.memory_space<smem>>
    %432 = vector.broadcast %431 : f32 to vector<8x256xf32>
    %433 = arith.mulf %432, %72 : vector<8x256xf32>
    %434 = arith.addf %430, %433 : vector<8x256xf32>
    %c6_182 = arith.constant 6 : index
    %c6_183 = arith.constant 6 : index
    %435 = memref.load %arg4[%c6_182, %c6_183] : memref<10x10xf32, #tpu.memory_space<smem>>
    %436 = vector.broadcast %435 : f32 to vector<8x256xf32>
    %437 = arith.mulf %436, %84 : vector<8x256xf32>
    %438 = arith.addf %434, %437 : vector<8x256xf32>
    %c6_184 = arith.constant 6 : index
    %c7_185 = arith.constant 7 : index
    %439 = memref.load %arg4[%c6_184, %c7_185] : memref<10x10xf32, #tpu.memory_space<smem>>
    %440 = vector.broadcast %439 : f32 to vector<8x256xf32>
    %441 = arith.mulf %440, %96 : vector<8x256xf32>
    %442 = arith.addf %438, %441 : vector<8x256xf32>
    %c6_186 = arith.constant 6 : index
    %c8_187 = arith.constant 8 : index
    %443 = memref.load %arg4[%c6_186, %c8_187] : memref<10x10xf32, #tpu.memory_space<smem>>
    %444 = vector.broadcast %443 : f32 to vector<8x256xf32>
    %445 = arith.mulf %444, %108 : vector<8x256xf32>
    %446 = arith.addf %442, %445 : vector<8x256xf32>
    %c6_188 = arith.constant 6 : index
    %c9_189 = arith.constant 9 : index
    %447 = memref.load %arg4[%c6_188, %c9_189] : memref<10x10xf32, #tpu.memory_space<smem>>
    %448 = vector.broadcast %447 : f32 to vector<8x256xf32>
    %449 = arith.mulf %448, %120 : vector<8x256xf32>
    %450 = arith.addf %446, %449 : vector<8x256xf32>
    %cst_190 = arith.constant 0.000000e+00 : f32
    %451 = vector.broadcast %cst_190 : f32 to vector<8x256xf32>
    %452 = arith.subf %451, %450 : vector<8x256xf32>
    %453 = math.exp %452 : vector<8x256xf32>
    %cst_191 = arith.constant 1.000000e+00 : f32
    %454 = vector.broadcast %cst_191 : f32 to vector<8x256xf32>
    %455 = arith.addf %454, %453 : vector<8x256xf32>
    %456 = tpu.reciprocal %455 {approx = true} : vector<8x256xf32> -> vector<8x256xf32>
    %c7_192 = arith.constant 7 : index
    %457 = memref.load %arg5[%c7_192] : memref<10xf32, #tpu.memory_space<smem>>
    %c7_193 = arith.constant 7 : index
    %c0_194 = arith.constant 0 : index
    %458 = memref.load %arg4[%c7_193, %c0_194] : memref<10x10xf32, #tpu.memory_space<smem>>
    %459 = vector.broadcast %458 : f32 to vector<8x256xf32>
    %460 = arith.mulf %459, %12 : vector<8x256xf32>
    %461 = vector.broadcast %457 : f32 to vector<8x256xf32>
    %462 = arith.addf %461, %460 : vector<8x256xf32>
    %c7_195 = arith.constant 7 : index
    %c1_196 = arith.constant 1 : index
    %463 = memref.load %arg4[%c7_195, %c1_196] : memref<10x10xf32, #tpu.memory_space<smem>>
    %464 = vector.broadcast %463 : f32 to vector<8x256xf32>
    %465 = arith.mulf %464, %24 : vector<8x256xf32>
    %466 = arith.addf %462, %465 : vector<8x256xf32>
    %c7_197 = arith.constant 7 : index
    %c2_198 = arith.constant 2 : index
    %467 = memref.load %arg4[%c7_197, %c2_198] : memref<10x10xf32, #tpu.memory_space<smem>>
    %468 = vector.broadcast %467 : f32 to vector<8x256xf32>
    %469 = arith.mulf %468, %36 : vector<8x256xf32>
    %470 = arith.addf %466, %469 : vector<8x256xf32>
    %c7_199 = arith.constant 7 : index
    %c3_200 = arith.constant 3 : index
    %471 = memref.load %arg4[%c7_199, %c3_200] : memref<10x10xf32, #tpu.memory_space<smem>>
    %472 = vector.broadcast %471 : f32 to vector<8x256xf32>
    %473 = arith.mulf %472, %48 : vector<8x256xf32>
    %474 = arith.addf %470, %473 : vector<8x256xf32>
    %c7_201 = arith.constant 7 : index
    %c4_202 = arith.constant 4 : index
    %475 = memref.load %arg4[%c7_201, %c4_202] : memref<10x10xf32, #tpu.memory_space<smem>>
    %476 = vector.broadcast %475 : f32 to vector<8x256xf32>
    %477 = arith.mulf %476, %60 : vector<8x256xf32>
    %478 = arith.addf %474, %477 : vector<8x256xf32>
    %c7_203 = arith.constant 7 : index
    %c5_204 = arith.constant 5 : index
    %479 = memref.load %arg4[%c7_203, %c5_204] : memref<10x10xf32, #tpu.memory_space<smem>>
    %480 = vector.broadcast %479 : f32 to vector<8x256xf32>
    %481 = arith.mulf %480, %72 : vector<8x256xf32>
    %482 = arith.addf %478, %481 : vector<8x256xf32>
    %c7_205 = arith.constant 7 : index
    %c6_206 = arith.constant 6 : index
    %483 = memref.load %arg4[%c7_205, %c6_206] : memref<10x10xf32, #tpu.memory_space<smem>>
    %484 = vector.broadcast %483 : f32 to vector<8x256xf32>
    %485 = arith.mulf %484, %84 : vector<8x256xf32>
    %486 = arith.addf %482, %485 : vector<8x256xf32>
    %c7_207 = arith.constant 7 : index
    %c7_208 = arith.constant 7 : index
    %487 = memref.load %arg4[%c7_207, %c7_208] : memref<10x10xf32, #tpu.memory_space<smem>>
    %488 = vector.broadcast %487 : f32 to vector<8x256xf32>
    %489 = arith.mulf %488, %96 : vector<8x256xf32>
    %490 = arith.addf %486, %489 : vector<8x256xf32>
    %c7_209 = arith.constant 7 : index
    %c8_210 = arith.constant 8 : index
    %491 = memref.load %arg4[%c7_209, %c8_210] : memref<10x10xf32, #tpu.memory_space<smem>>
    %492 = vector.broadcast %491 : f32 to vector<8x256xf32>
    %493 = arith.mulf %492, %108 : vector<8x256xf32>
    %494 = arith.addf %490, %493 : vector<8x256xf32>
    %c7_211 = arith.constant 7 : index
    %c9_212 = arith.constant 9 : index
    %495 = memref.load %arg4[%c7_211, %c9_212] : memref<10x10xf32, #tpu.memory_space<smem>>
    %496 = vector.broadcast %495 : f32 to vector<8x256xf32>
    %497 = arith.mulf %496, %120 : vector<8x256xf32>
    %498 = arith.addf %494, %497 : vector<8x256xf32>
    %cst_213 = arith.constant 0.000000e+00 : f32
    %499 = vector.broadcast %cst_213 : f32 to vector<8x256xf32>
    %500 = arith.subf %499, %498 : vector<8x256xf32>
    %501 = math.exp %500 : vector<8x256xf32>
    %cst_214 = arith.constant 1.000000e+00 : f32
    %502 = vector.broadcast %cst_214 : f32 to vector<8x256xf32>
    %503 = arith.addf %502, %501 : vector<8x256xf32>
    %504 = tpu.reciprocal %503 {approx = true} : vector<8x256xf32> -> vector<8x256xf32>
    %c8_215 = arith.constant 8 : index
    %505 = memref.load %arg5[%c8_215] : memref<10xf32, #tpu.memory_space<smem>>
    %c8_216 = arith.constant 8 : index
    %c0_217 = arith.constant 0 : index
    %506 = memref.load %arg4[%c8_216, %c0_217] : memref<10x10xf32, #tpu.memory_space<smem>>
    %507 = vector.broadcast %506 : f32 to vector<8x256xf32>
    %508 = arith.mulf %507, %12 : vector<8x256xf32>
    %509 = vector.broadcast %505 : f32 to vector<8x256xf32>
    %510 = arith.addf %509, %508 : vector<8x256xf32>
    %c8_218 = arith.constant 8 : index
    %c1_219 = arith.constant 1 : index
    %511 = memref.load %arg4[%c8_218, %c1_219] : memref<10x10xf32, #tpu.memory_space<smem>>
    %512 = vector.broadcast %511 : f32 to vector<8x256xf32>
    %513 = arith.mulf %512, %24 : vector<8x256xf32>
    %514 = arith.addf %510, %513 : vector<8x256xf32>
    %c8_220 = arith.constant 8 : index
    %c2_221 = arith.constant 2 : index
    %515 = memref.load %arg4[%c8_220, %c2_221] : memref<10x10xf32, #tpu.memory_space<smem>>
    %516 = vector.broadcast %515 : f32 to vector<8x256xf32>
    %517 = arith.mulf %516, %36 : vector<8x256xf32>
    %518 = arith.addf %514, %517 : vector<8x256xf32>
    %c8_222 = arith.constant 8 : index
    %c3_223 = arith.constant 3 : index
    %519 = memref.load %arg4[%c8_222, %c3_223] : memref<10x10xf32, #tpu.memory_space<smem>>
    %520 = vector.broadcast %519 : f32 to vector<8x256xf32>
    %521 = arith.mulf %520, %48 : vector<8x256xf32>
    %522 = arith.addf %518, %521 : vector<8x256xf32>
    %c8_224 = arith.constant 8 : index
    %c4_225 = arith.constant 4 : index
    %523 = memref.load %arg4[%c8_224, %c4_225] : memref<10x10xf32, #tpu.memory_space<smem>>
    %524 = vector.broadcast %523 : f32 to vector<8x256xf32>
    %525 = arith.mulf %524, %60 : vector<8x256xf32>
    %526 = arith.addf %522, %525 : vector<8x256xf32>
    %c8_226 = arith.constant 8 : index
    %c5_227 = arith.constant 5 : index
    %527 = memref.load %arg4[%c8_226, %c5_227] : memref<10x10xf32, #tpu.memory_space<smem>>
    %528 = vector.broadcast %527 : f32 to vector<8x256xf32>
    %529 = arith.mulf %528, %72 : vector<8x256xf32>
    %530 = arith.addf %526, %529 : vector<8x256xf32>
    %c8_228 = arith.constant 8 : index
    %c6_229 = arith.constant 6 : index
    %531 = memref.load %arg4[%c8_228, %c6_229] : memref<10x10xf32, #tpu.memory_space<smem>>
    %532 = vector.broadcast %531 : f32 to vector<8x256xf32>
    %533 = arith.mulf %532, %84 : vector<8x256xf32>
    %534 = arith.addf %530, %533 : vector<8x256xf32>
    %c8_230 = arith.constant 8 : index
    %c7_231 = arith.constant 7 : index
    %535 = memref.load %arg4[%c8_230, %c7_231] : memref<10x10xf32, #tpu.memory_space<smem>>
    %536 = vector.broadcast %535 : f32 to vector<8x256xf32>
    %537 = arith.mulf %536, %96 : vector<8x256xf32>
    %538 = arith.addf %534, %537 : vector<8x256xf32>
    %c8_232 = arith.constant 8 : index
    %c8_233 = arith.constant 8 : index
    %539 = memref.load %arg4[%c8_232, %c8_233] : memref<10x10xf32, #tpu.memory_space<smem>>
    %540 = vector.broadcast %539 : f32 to vector<8x256xf32>
    %541 = arith.mulf %540, %108 : vector<8x256xf32>
    %542 = arith.addf %538, %541 : vector<8x256xf32>
    %c8_234 = arith.constant 8 : index
    %c9_235 = arith.constant 9 : index
    %543 = memref.load %arg4[%c8_234, %c9_235] : memref<10x10xf32, #tpu.memory_space<smem>>
    %544 = vector.broadcast %543 : f32 to vector<8x256xf32>
    %545 = arith.mulf %544, %120 : vector<8x256xf32>
    %546 = arith.addf %542, %545 : vector<8x256xf32>
    %cst_236 = arith.constant 0.000000e+00 : f32
    %547 = vector.broadcast %cst_236 : f32 to vector<8x256xf32>
    %548 = arith.subf %547, %546 : vector<8x256xf32>
    %549 = math.exp %548 : vector<8x256xf32>
    %cst_237 = arith.constant 1.000000e+00 : f32
    %550 = vector.broadcast %cst_237 : f32 to vector<8x256xf32>
    %551 = arith.addf %550, %549 : vector<8x256xf32>
    %552 = tpu.reciprocal %551 {approx = true} : vector<8x256xf32> -> vector<8x256xf32>
    %c9_238 = arith.constant 9 : index
    %553 = memref.load %arg5[%c9_238] : memref<10xf32, #tpu.memory_space<smem>>
    %c9_239 = arith.constant 9 : index
    %c0_240 = arith.constant 0 : index
    %554 = memref.load %arg4[%c9_239, %c0_240] : memref<10x10xf32, #tpu.memory_space<smem>>
    %555 = vector.broadcast %554 : f32 to vector<8x256xf32>
    %556 = arith.mulf %555, %12 : vector<8x256xf32>
    %557 = vector.broadcast %553 : f32 to vector<8x256xf32>
    %558 = arith.addf %557, %556 : vector<8x256xf32>
    %c9_241 = arith.constant 9 : index
    %c1_242 = arith.constant 1 : index
    %559 = memref.load %arg4[%c9_241, %c1_242] : memref<10x10xf32, #tpu.memory_space<smem>>
    %560 = vector.broadcast %559 : f32 to vector<8x256xf32>
    %561 = arith.mulf %560, %24 : vector<8x256xf32>
    %562 = arith.addf %558, %561 : vector<8x256xf32>
    %c9_243 = arith.constant 9 : index
    %c2_244 = arith.constant 2 : index
    %563 = memref.load %arg4[%c9_243, %c2_244] : memref<10x10xf32, #tpu.memory_space<smem>>
    %564 = vector.broadcast %563 : f32 to vector<8x256xf32>
    %565 = arith.mulf %564, %36 : vector<8x256xf32>
    %566 = arith.addf %562, %565 : vector<8x256xf32>
    %c9_245 = arith.constant 9 : index
    %c3_246 = arith.constant 3 : index
    %567 = memref.load %arg4[%c9_245, %c3_246] : memref<10x10xf32, #tpu.memory_space<smem>>
    %568 = vector.broadcast %567 : f32 to vector<8x256xf32>
    %569 = arith.mulf %568, %48 : vector<8x256xf32>
    %570 = arith.addf %566, %569 : vector<8x256xf32>
    %c9_247 = arith.constant 9 : index
    %c4_248 = arith.constant 4 : index
    %571 = memref.load %arg4[%c9_247, %c4_248] : memref<10x10xf32, #tpu.memory_space<smem>>
    %572 = vector.broadcast %571 : f32 to vector<8x256xf32>
    %573 = arith.mulf %572, %60 : vector<8x256xf32>
    %574 = arith.addf %570, %573 : vector<8x256xf32>
    %c9_249 = arith.constant 9 : index
    %c5_250 = arith.constant 5 : index
    %575 = memref.load %arg4[%c9_249, %c5_250] : memref<10x10xf32, #tpu.memory_space<smem>>
    %576 = vector.broadcast %575 : f32 to vector<8x256xf32>
    %577 = arith.mulf %576, %72 : vector<8x256xf32>
    %578 = arith.addf %574, %577 : vector<8x256xf32>
    %c9_251 = arith.constant 9 : index
    %c6_252 = arith.constant 6 : index
    %579 = memref.load %arg4[%c9_251, %c6_252] : memref<10x10xf32, #tpu.memory_space<smem>>
    %580 = vector.broadcast %579 : f32 to vector<8x256xf32>
    %581 = arith.mulf %580, %84 : vector<8x256xf32>
    %582 = arith.addf %578, %581 : vector<8x256xf32>
    %c9_253 = arith.constant 9 : index
    %c7_254 = arith.constant 7 : index
    %583 = memref.load %arg4[%c9_253, %c7_254] : memref<10x10xf32, #tpu.memory_space<smem>>
    %584 = vector.broadcast %583 : f32 to vector<8x256xf32>
    %585 = arith.mulf %584, %96 : vector<8x256xf32>
    %586 = arith.addf %582, %585 : vector<8x256xf32>
    %c9_255 = arith.constant 9 : index
    %c8_256 = arith.constant 8 : index
    %587 = memref.load %arg4[%c9_255, %c8_256] : memref<10x10xf32, #tpu.memory_space<smem>>
    %588 = vector.broadcast %587 : f32 to vector<8x256xf32>
    %589 = arith.mulf %588, %108 : vector<8x256xf32>
    %590 = arith.addf %586, %589 : vector<8x256xf32>
    %c9_257 = arith.constant 9 : index
    %c9_258 = arith.constant 9 : index
    %591 = memref.load %arg4[%c9_257, %c9_258] : memref<10x10xf32, #tpu.memory_space<smem>>
    %592 = vector.broadcast %591 : f32 to vector<8x256xf32>
    %593 = arith.mulf %592, %120 : vector<8x256xf32>
    %594 = arith.addf %590, %593 : vector<8x256xf32>
    %cst_259 = arith.constant 0.000000e+00 : f32
    %595 = vector.broadcast %cst_259 : f32 to vector<8x256xf32>
    %596 = arith.subf %595, %594 : vector<8x256xf32>
    %597 = math.exp %596 : vector<8x256xf32>
    %cst_260 = arith.constant 1.000000e+00 : f32
    %598 = vector.broadcast %cst_260 : f32 to vector<8x256xf32>
    %599 = arith.addf %598, %597 : vector<8x256xf32>
    %600 = tpu.reciprocal %599 {approx = true} : vector<8x256xf32> -> vector<8x256xf32>
    %c0_261 = arith.constant 0 : index
    %601 = memref.load %arg7[%c0_261] : memref<1xf32, #tpu.memory_space<smem>>
    %c0_262 = arith.constant 0 : index
    %602 = memref.load %arg6[%c0_262] : memref<10xf32, #tpu.memory_space<smem>>
    %603 = vector.broadcast %602 : f32 to vector<8x256xf32>
    %604 = arith.mulf %603, %168 : vector<8x256xf32>
    %605 = vector.broadcast %601 : f32 to vector<8x256xf32>
    %606 = arith.addf %605, %604 : vector<8x256xf32>
    %c1_263 = arith.constant 1 : index
    %607 = memref.load %arg6[%c1_263] : memref<10xf32, #tpu.memory_space<smem>>
    %608 = vector.broadcast %607 : f32 to vector<8x256xf32>
    %609 = arith.mulf %608, %216 : vector<8x256xf32>
    %610 = arith.addf %606, %609 : vector<8x256xf32>
    %c2_264 = arith.constant 2 : index
    %611 = memref.load %arg6[%c2_264] : memref<10xf32, #tpu.memory_space<smem>>
    %612 = vector.broadcast %611 : f32 to vector<8x256xf32>
    %613 = arith.mulf %612, %264 : vector<8x256xf32>
    %614 = arith.addf %610, %613 : vector<8x256xf32>
    %c3_265 = arith.constant 3 : index
    %615 = memref.load %arg6[%c3_265] : memref<10xf32, #tpu.memory_space<smem>>
    %616 = vector.broadcast %615 : f32 to vector<8x256xf32>
    %617 = arith.mulf %616, %312 : vector<8x256xf32>
    %618 = arith.addf %614, %617 : vector<8x256xf32>
    %c4_266 = arith.constant 4 : index
    %619 = memref.load %arg6[%c4_266] : memref<10xf32, #tpu.memory_space<smem>>
    %620 = vector.broadcast %619 : f32 to vector<8x256xf32>
    %621 = arith.mulf %620, %360 : vector<8x256xf32>
    %622 = arith.addf %618, %621 : vector<8x256xf32>
    %c5_267 = arith.constant 5 : index
    %623 = memref.load %arg6[%c5_267] : memref<10xf32, #tpu.memory_space<smem>>
    %624 = vector.broadcast %623 : f32 to vector<8x256xf32>
    %625 = arith.mulf %624, %408 : vector<8x256xf32>
    %626 = arith.addf %622, %625 : vector<8x256xf32>
    %c6_268 = arith.constant 6 : index
    %627 = memref.load %arg6[%c6_268] : memref<10xf32, #tpu.memory_space<smem>>
    %628 = vector.broadcast %627 : f32 to vector<8x256xf32>
    %629 = arith.mulf %628, %456 : vector<8x256xf32>
    %630 = arith.addf %626, %629 : vector<8x256xf32>
    %c7_269 = arith.constant 7 : index
    %631 = memref.load %arg6[%c7_269] : memref<10xf32, #tpu.memory_space<smem>>
    %632 = vector.broadcast %631 : f32 to vector<8x256xf32>
    %633 = arith.mulf %632, %504 : vector<8x256xf32>
    %634 = arith.addf %630, %633 : vector<8x256xf32>
    %c8_270 = arith.constant 8 : index
    %635 = memref.load %arg6[%c8_270] : memref<10xf32, #tpu.memory_space<smem>>
    %636 = vector.broadcast %635 : f32 to vector<8x256xf32>
    %637 = arith.mulf %636, %552 : vector<8x256xf32>
    %638 = arith.addf %634, %637 : vector<8x256xf32>
    %c9_271 = arith.constant 9 : index
    %639 = memref.load %arg6[%c9_271] : memref<10xf32, #tpu.memory_space<smem>>
    %640 = vector.broadcast %639 : f32 to vector<8x256xf32>
    %641 = arith.mulf %640, %600 : vector<8x256xf32>
    %642 = arith.addf %638, %641 : vector<8x256xf32>
    %c0_272 = arith.constant 0 : index
    %c0_273 = arith.constant 0 : index
    %643 = vector.load %arg8[%c0_272, %c0_273] : memref<8x256xf32, #tpu.memory_space<vmem>>, vector<8x256xf32>
    tpu.vector_store %arg8[%c0_272, %c0_273], %642 {strides = array<i32>} : memref<8x256xf32, #tpu.memory_space<vmem>>, vector<8x256xf32>,
    return
  }
  func.func @transform_0(%arg0: i32) -> (i32, i32) {
    %c0_i32 = arith.constant 0 : i32
    %c0_i32_0 = arith.constant 0 : i32
    return %arg0, %c0_i32 : i32, i32
  }
  func.func @transform_1(%arg0: i32) -> i32 {
    %c0_i32 = arith.constant 0 : i32
    %c0_i32_0 = arith.constant 0 : i32
    return %c0_i32 : i32
  }
  func.func @transform_2(%arg0: i32) -> i32 {
    %c0_i32 = arith.constant 0 : i32
    %c0_i32_0 = arith.constant 0 : i32
    return %c0_i32 : i32
  }
  func.func @transform_3(%arg0: i32) -> (i32, i32) {
    %c0_i32 = arith.constant 0 : i32
    %c0_i32_0 = arith.constant 0 : i32
    %c0_i32_1 = arith.constant 0 : i32
    return %c0_i32, %c0_i32_0 : i32, i32
  }
  func.func @transform_4(%arg0: i32) -> i32 {
    %c0_i32 = arith.constant 0 : i32
    %c0_i32_0 = arith.constant 0 : i32
    return %c0_i32 : i32
  }
  func.func @transform_5(%arg0: i32) -> i32 {
    %c0_i32 = arith.constant 0 : i32
    %c0_i32_0 = arith.constant 0 : i32
    return %c0_i32 : i32
  }
  func.func @transform_6(%arg0: i32) -> i32 {
    %c0_i32 = arith.constant 0 : i32
    %c0_i32_0 = arith.constant 0 : i32
    return %c0_i32 : i32
  }
  func.func @transform_7(%arg0: i32) -> (i32, i32) {
    %c0_i32 = arith.constant 0 : i32
    %c0_i32_0 = arith.constant 0 : i32
    return %arg0, %c0_i32 : i32, i32
  }
}

</mosaic_0001>

<llo_original>
// kernel: tpu_custom_call.1
$region0: #{tpu_custom_call.1}
  #allocation0 [shape = 'u32[]', space=smem, size = 0x4, offset = 0x4, fixed_abs, tag = 'smem constant byte address 0x4 - core index']
  #allocation1 [shape = 'u32[72,128]{1,0:T(1,128)}', space=vmem, size = 0x9000, scoped, tag = 'internal scratch']
  #allocation2 [shape = 'f32[1]{0:T(128)S(6)}', space=smem, size = 0x200, scoped, tag = 'scoped memory for tpu_custom_call.1']
  %s0 = inlined_call_operand.hbm [shape: f32[8,256], index: 0, kind: input, shape index: {}]
  %s1 = inlined_call_operand.vmem [shape: f32[10], index: 1, kind: input, shape index: {}]
  %s2 = inlined_call_operand.vmem [shape: f32[10], index: 2, kind: input, shape index: {}]
  %s3 = inlined_call_operand.hbm [shape: f32[10,10], index: 3, kind: input, shape index: {}]
  %s4 = inlined_call_operand.vmem [shape: f32[10], index: 4, kind: input, shape index: {}]
  %s5 = inlined_call_operand.vmem [shape: f32[10], index: 5, kind: input, shape index: {}]
  %s6 = inlined_call_operand.<no memory space> [shape: f32[1], index: 6, kind: input, shape index: {}]
  %s7 = inlined_call_operand.hbm [shape: f32[8,256], index: 7, kind: output, shape index: {}]
  %s8 = sld [smem:[#allocation0]]
  $region62: #{tpu_custom_call.1} parent=0
    _
  %s10 = ssub.s32 1, %s8
  %s11 = scalar_select 0, %s10, %s8
  %12 = sst [smem:[#allocation2]] %s6
  $region1: #{tpu_custom_call.1} parent=0
    #allocation3 [shape = 'u8[8192]{0}', space=vmem, size = 0x2000, scoped, tag = 'input window, operand 0, single buffered']
    #allocation4 [shape = 's32[1]{0}', space=sflag, size = 0x4, scoped, tag = 'scoped memory for tpu_custom_call.1']
    #allocation5 [shape = 's32[1]{0}', space=sflag, size = 0x4, scoped, tag = 'scoped memory for tpu_custom_call.1']
    #allocation6 [shape = 's32[1]{0}', space=sflag, size = 0x4, scoped, tag = 'scoped memory for tpu_custom_call.1']
    #allocation7 [shape = 's32[1]{0}', space=sflag, size = 0x4, scoped, tag = 'scoped memory for tpu_custom_call.1']
    #allocation8 [shape = 'u8[512]{0}', space=smem, size = 0x200, scoped, tag = 'input window, operand 1, single buffered']
    #allocation9 [shape = 'u8[512]{0}', space=smem, size = 0x200, scoped, tag = 'input window, operand 2, single buffered']
    #allocation10 [shape = 's32[1]{0}', space=sflag, size = 0x4, scoped, tag = 'scoped memory for tpu_custom_call.1']
    #allocation11 [shape = 'u8[8192]{0}', space=smem, size = 0x2000, scoped, tag = 'input window, operand 3, single buffered']
    #allocation12 [shape = 'u8[512]{0}', space=smem, size = 0x200, scoped, tag = 'input window, operand 4, single buffered']
    #allocation13 [shape = 'u8[512]{0}', space=smem, size = 0x200, scoped, tag = 'input window, operand 5, single buffered']
    #allocation14 [shape = 's32[1]{0}', space=sflag, size = 0x4, scoped, tag = 'scoped memory for tpu_custom_call.1']
    #allocation15 [shape = 'u8[8192]{0}', space=vmem, size = 0x2000, scoped, tag = 'output window, operand 0, single buffered']
    %13 = vsyncpa [#allocation4], 0
    %14 = vsyncpa [#allocation7], 0
    %15 = vsyncpa [#allocation10], 0
    %16 = vsyncpa [#allocation6], 0
    %17 = vsyncpa [#allocation14], 0
    %18 = vsyncpa [#allocation5], 0
    // Predicated region
    $region2: #{tpu_custom_call.1} parent=1 // pred_check
      _
    $region3: #{tpu_custom_call.1} parent=1 // pred_check_branch
      %20 = sbr.rel (0) target = $region5
    $region4: #{tpu_custom_call.1} parent=1 // pred_region
      %22 = vsyncadd [#allocation4], 0
      %s24 = sshll.u32 %s0, 4
      %s25 = int_to_ptr.hbm [resolvable:$true] %s24
      %s26 = sshll.u32 [#allocation3], 4
      %s27 = int_to_ptr.vmem [resolvable:$true] %s26
      %29 = dma.hbm_to_vmem [thread:$0]  %s25, 256, %s27, [#allocation4]
    $region5: #{tpu_custom_call.1} parent=1 // pred_fallthru
      _
    // Predicated region
    $region6: #{tpu_custom_call.1} parent=1 // pred_check
      _
    $region7: #{tpu_custom_call.1} parent=1 // pred_check_branch
      %31 = sbr.rel (0) target = $region9
    $region8: #{tpu_custom_call.1} parent=1 // pred_region
      %33 = vsyncadd [#allocation7], 0
      %s35 = sshll.u32 %s1, 4
      %s36 = int_to_ptr.vmem [resolvable:$true] %s35
      %38 = dma.vmem_to_smem %s36, 16, [#allocation8], [#allocation7]
    $region9: #{tpu_custom_call.1} parent=1 // pred_fallthru
      _
    // Predicated region
    $region10: #{tpu_custom_call.1} parent=1 // pred_check
      _
    $region11: #{tpu_custom_call.1} parent=1 // pred_check_branch
      %40 = sbr.rel (0) target = $region13
    $region12: #{tpu_custom_call.1} parent=1 // pred_region
      %42 = vsyncadd [#allocation10], 0
      %s44 = sshll.u32 %s2, 4
      %s45 = int_to_ptr.vmem [resolvable:$true] %s44
      %47 = dma.vmem_to_smem %s45, 16, [#allocation9], [#allocation10]
    $region13: #{tpu_custom_call.1} parent=1 // pred_fallthru
      _
    // Predicated region
    $region14: #{tpu_custom_call.1} parent=1 // pred_check
      _
    $region15: #{tpu_custom_call.1} parent=1 // pred_check_branch
      %49 = sbr.rel (0) target = $region17
    $region16: #{tpu_custom_call.1} parent=1 // pred_region
      %51 = vsyncadd [#allocation6], 0
      %s52 = sshll.u32 %s3, 4
      %s53 = int_to_ptr.hbm [resolvable:$true] %s52
      %58 = dma.hbm_to_smem %s53, 256, [#allocation11], [#allocation6], 128, 128, 8
    $region17: #{tpu_custom_call.1} parent=1 // pred_fallthru
      _
    // Predicated region
    $region18: #{tpu_custom_call.1} parent=1 // pred_check
      _
    $region19: #{tpu_custom_call.1} parent=1 // pred_check_branch
      %60 = sbr.rel (0) target = $region21
    $region20: #{tpu_custom_call.1} parent=1 // pred_region
      %62 = vsyncadd [#allocation10], 0
      %s64 = sshll.u32 %s4, 4
      %s65 = int_to_ptr.vmem [resolvable:$true] %s64
      %67 = dma.vmem_to_smem %s65, 16, [#allocation12], [#allocation10]
    $region21: #{tpu_custom_call.1} parent=1 // pred_fallthru
      _
    // Predicated region
    $region22: #{tpu_custom_call.1} parent=1 // pred_check
      _
    $region23: #{tpu_custom_call.1} parent=1 // pred_check_branch
      %69 = sbr.rel (0) target = $region25
    $region24: #{tpu_custom_call.1} parent=1 // pred_region
      %71 = vsyncadd [#allocation14], 0
      %s73 = sshll.u32 %s5, 4
      %s74 = int_to_ptr.vmem [resolvable:$true] %s73
      %76 = dma.vmem_to_smem %s74, 16, [#allocation13], [#allocation14]
    $region25: #{tpu_custom_call.1} parent=1 // pred_fallthru
      _
    // Predicated region
    $region26: #{tpu_custom_call.1} parent=1 // pred_check
      _
    $region27: #{tpu_custom_call.1} parent=1 // pred_check_branch
      %78 = sbr.rel (0) target = $region29
    $region28: #{tpu_custom_call.1} parent=1 // pred_region
      _
    $region29: #{tpu_custom_call.1} parent=1 // pred_fallthru
      _
    // Predicated region
    $region30: #{tpu_custom_call.1} parent=1 // pred_check
      _
    $region31: #{tpu_custom_call.1} parent=1 // pred_check_branch
      %80 = sbr.rel (0) target = $region33
    $region32: #{tpu_custom_call.1} parent=1 // pred_region
      %82 = dma.done [#allocation4], 256
    $region33: #{tpu_custom_call.1} parent=1 // pred_fallthru
      _
    // Predicated region
    $region34: #{tpu_custom_call.1} parent=1 // pred_check
      _
    $region35: #{tpu_custom_call.1} parent=1 // pred_check_branch
      %84 = sbr.rel (0) target = $region37
    $region36: #{tpu_custom_call.1} parent=1 // pred_region
      %86 = dma.done [#allocation7], 16
    $region37: #{tpu_custom_call.1} parent=1 // pred_fallthru
      _
    // Predicated region
    $region38: #{tpu_custom_call.1} parent=1 // pred_check
      _
    $region39: #{tpu_custom_call.1} parent=1 // pred_check_branch
      %88 = sbr.rel (0) target = $region41
    $region40: #{tpu_custom_call.1} parent=1 // pred_region
      %90 = dma.done [#allocation10], 16
    $region41: #{tpu_custom_call.1} parent=1 // pred_fallthru
      _
    // Predicated region
    $region42: #{tpu_custom_call.1} parent=1 // pred_check
      _
    $region43: #{tpu_custom_call.1} parent=1 // pred_check_branch
      %92 = sbr.rel (0) target = $region45
    $region44: #{tpu_custom_call.1} parent=1 // pred_region
      %94 = dma.done [#allocation6], 256
    $region45: #{tpu_custom_call.1} parent=1 // pred_fallthru
      _
    // Predicated region
    $region46: #{tpu_custom_call.1} parent=1 // pred_check
      _
    $region47: #{tpu_custom_call.1} parent=1 // pred_check_branch
      %96 = sbr.rel (0) target = $region49
    $region48: #{tpu_custom_call.1} parent=1 // pred_region
      %98 = dma.done [#allocation10], 16
    $region49: #{tpu_custom_call.1} parent=1 // pred_fallthru
      _
    // Predicated region
    $region50: #{tpu_custom_call.1} parent=1 // pred_check
      _
    $region51: #{tpu_custom_call.1} parent=1 // pred_check_branch
      %100 = sbr.rel (0) target = $region53
    $region52: #{tpu_custom_call.1} parent=1 // pred_region
      %102 = dma.done [#allocation14], 16
    $region53: #{tpu_custom_call.1} parent=1 // pred_fallthru
      _
    %103 = sfence
    %v104 = vld [vmem:[#allocation3] sm:$0xff]
    %v105 = vld [vmem:[#allocation3 + $0x8] sm:$0xff]
    %s106 = sld [smem:[#allocation8]]
    %v107 = vstv %s106
    %v108 = vmul.f32 %v107, %v104
    %v109 = vmul.f32 %v107, %v105
    %s110 = sld [smem:[#allocation9]]
    %v111 = vstv %s110
    %v112 = vadd.f32 %v108, %v111
    %v113 = vadd.f32 %v109, %v111
    %v114 = vsub.f32 0.0, %v112
    %v115 = vsub.f32 0.0, %v113
    %v116 = vmul.f32 %v114, 1.442695
    %v117 = vpow.pop %v116
    %v118 = vmul.f32 %v115, 1.442695
    %v119 = vpow.pop %v118
    %v120 = vadd.f32 %v117, 1.0
    %v121 = vadd.f32 %v119, 1.0
    %v122 = vrcp.pop %v120
    %v123 = vrcp.pop %v121
    %s124 = sld [smem:[#allocation8 + $0x1]]
    %v125 = vstv %s124
    %v126 = vmul.f32 %v125, %v104
    %v127 = vmul.f32 %v125, %v105
    %s128 = sld [smem:[#allocation9 + $0x1]]
    %v129 = vstv %s128
    %v130 = vadd.f32 %v126, %v129
    %v131 = vadd.f32 %v127, %v129
    %v132 = vsub.f32 0.0, %v130
    %v133 = vsub.f32 0.0, %v131
    %v134 = vmul.f32 %v132, 1.442695
    %v135 = vpow.pop %v134
    %v136 = vmul.f32 %v133, 1.442695
    %v137 = vpow.pop %v136
    %v138 = vadd.f32 %v135, 1.0
    %v139 = vadd.f32 %v137, 1.0
    %v140 = vrcp.pop %v138
    %v141 = vrcp.pop %v139
    %s142 = sld [smem:[#allocation8 + $0x2]]
    %v143 = vstv %s142
    %v144 = vmul.f32 %v143, %v104
    %v145 = vmul.f32 %v143, %v105
    %s146 = sld [smem:[#allocation9 + $0x2]]
    %v147 = vstv %s146
    %v148 = vadd.f32 %v144, %v147
    %v149 = vadd.f32 %v145, %v147
    %v150 = vsub.f32 0.0, %v148
    %v151 = vsub.f32 0.0, %v149
    %v152 = vmul.f32 %v150, 1.442695
    %v153 = vpow.pop %v152
    %v154 = vmul.f32 %v151, 1.442695
    %v155 = vpow.pop %v154
    %v156 = vadd.f32 %v153, 1.0
    %v157 = vadd.f32 %v155, 1.0
    %v158 = vrcp.pop %v156
    %v159 = vrcp.pop %v157
    %s160 = sld [smem:[#allocation8 + $0x3]]
    %v161 = vstv %s160
    %v162 = vmul.f32 %v161, %v104
    %v163 = vmul.f32 %v161, %v105
    %s164 = sld [smem:[#allocation9 + $0x3]]
    %v165 = vstv %s164
    %v166 = vadd.f32 %v162, %v165
    %v167 = vadd.f32 %v163, %v165
    %v168 = vsub.f32 0.0, %v166
    %v169 = vsub.f32 0.0, %v167
    %v170 = vmul.f32 %v168, 1.442695
    %v171 = vpow.pop %v170
    %v172 = vmul.f32 %v169, 1.442695
    %v173 = vpow.pop %v172
    %v174 = vadd.f32 %v171, 1.0
    %v175 = vadd.f32 %v173, 1.0
    %v176 = vrcp.pop %v174
    %v177 = vrcp.pop %v175
    %s178 = sld [smem:[#allocation8 + $0x4]]
    %v179 = vstv %s178
    %v180 = vmul.f32 %v179, %v104
    %v181 = vmul.f32 %v179, %v105
    %s182 = sld [smem:[#allocation9 + $0x4]]
    %v183 = vstv %s182
    %v184 = vadd.f32 %v180, %v183
    %v185 = vadd.f32 %v181, %v183
    %v186 = vsub.f32 0.0, %v184
    %v187 = vsub.f32 0.0, %v185
    %v188 = vmul.f32 %v186, 1.442695
    %v189 = vpow.pop %v188
    %v190 = vmul.f32 %v187, 1.442695
    %v191 = vpow.pop %v190
    %v192 = vadd.f32 %v189, 1.0
    %v193 = vadd.f32 %v191, 1.0
    %v194 = vrcp.pop %v192
    %v195 = vrcp.pop %v193
    %s196 = sld [smem:[#allocation8 + $0x5]]
    %v197 = vstv %s196
    %v198 = vmul.f32 %v197, %v104
    %v199 = vmul.f32 %v197, %v105
    %s200 = sld [smem:[#allocation9 + $0x5]]
    %v201 = vstv %s200
    %v202 = vadd.f32 %v198, %v201
    %v203 = vadd.f32 %v199, %v201
    %v204 = vsub.f32 0.0, %v202
    %v205 = vsub.f32 0.0, %v203
    %v206 = vmul.f32 %v204, 1.442695
    %v207 = vpow.pop %v206
    %v208 = vmul.f32 %v205, 1.442695
    %v209 = vpow.pop %v208
    %v210 = vadd.f32 %v207, 1.0
    %v211 = vadd.f32 %v209, 1.0
    %v212 = vrcp.pop %v210
    %v213 = vrcp.pop %v211
    %s214 = sld [smem:[#allocation8 + $0x6]]
    %v215 = vstv %s214
    %v216 = vmul.f32 %v215, %v104
    %v217 = vmul.f32 %v215, %v105
    %s218 = sld [smem:[#allocation9 + $0x6]]
    %v219 = vstv %s218
    %v220 = vadd.f32 %v216, %v219
    %v221 = vadd.f32 %v217, %v219
    %v222 = vsub.f32 0.0, %v220
    %v223 = vsub.f32 0.0, %v221
    %v224 = vmul.f32 %v222, 1.442695
    %v225 = vpow.pop %v224
    %v226 = vmul.f32 %v223, 1.442695
    %v227 = vpow.pop %v226
    %v228 = vadd.f32 %v225, 1.0
    %v229 = vadd.f32 %v227, 1.0
    %v230 = vrcp.pop %v228
    %v231 = vrcp.pop %v229
    %s232 = sld [smem:[#allocation8 + $0x7]]
    %v233 = vstv %s232
    %v234 = vmul.f32 %v233, %v104
    %v235 = vmul.f32 %v233, %v105
    %s236 = sld [smem:[#allocation9 + $0x7]]
    %v237 = vstv %s236
    %v238 = vadd.f32 %v234, %v237
    %v239 = vadd.f32 %v235, %v237
    %v240 = vsub.f32 0.0, %v238
    %v241 = vsub.f32 0.0, %v239
    %v242 = vmul.f32 %v240, 1.442695
    %v243 = vpow.pop %v242
    %v244 = vmul.f32 %v241, 1.442695
    %v245 = vpow.pop %v244
    %v246 = vadd.f32 %v243, 1.0
    %v247 = vadd.f32 %v245, 1.0
    %v248 = vrcp.pop %v246
    %v249 = vrcp.pop %v247
    %s250 = sld [smem:[#allocation8 + $0x8]]
    %v251 = vstv %s250
    %v252 = vmul.f32 %v251, %v104
    %v253 = vmul.f32 %v251, %v105
    %s254 = sld [smem:[#allocation9 + $0x8]]
    %v255 = vstv %s254
    %v256 = vadd.f32 %v252, %v255
    %v257 = vadd.f32 %v253, %v255
    %v258 = vsub.f32 0.0, %v256
    %v259 = vsub.f32 0.0, %v257
    %v260 = vmul.f32 %v258, 1.442695
    %v261 = vpow.pop %v260
    %v262 = vmul.f32 %v259, 1.442695
    %v263 = vpow.pop %v262
    %v264 = vadd.f32 %v261, 1.0
    %v265 = vadd.f32 %v263, 1.0
    %v266 = vrcp.pop %v264
    %v267 = vrcp.pop %v265
    %s268 = sld [smem:[#allocation8 + $0x9]]
    %v269 = vstv %s268
    %v270 = vmul.f32 %v269, %v104
    %v271 = vmul.f32 %v269, %v105
    %s272 = sld [smem:[#allocation9 + $0x9]]
    %v273 = vstv %s272
    %v274 = vadd.f32 %v270, %v273
    %v275 = vadd.f32 %v271, %v273
    %v276 = vsub.f32 0.0, %v274
    %v277 = vsub.f32 0.0, %v275
    %v278 = vmul.f32 %v276, 1.442695
    %v279 = vpow.pop %v278
    %v280 = vmul.f32 %v277, 1.442695
    %v281 = vpow.pop %v280
    %v282 = vadd.f32 %v279, 1.0
    %v283 = vadd.f32 %v281, 1.0
    %v284 = vrcp.pop %v282
    %v285 = vrcp.pop %v283
    %s286 = sld [smem:[#allocation12]]
    %s287 = sld [smem:[#allocation11]]
    %v288 = vstv %s287
    %v289 = vmul.f32 %v288, %v122
    %v290 = vmul.f32 %v288, %v123
    %v291 = vstv %s286
    %v292 = vadd.f32 %v291, %v289
    %v293 = vadd.f32 %v291, %v290
    %s294 = sld [smem:[#allocation11 + $0x1]]
    %v295 = vstv %s294
    %v296 = vmul.f32 %v295, %v140
    %v297 = vmul.f32 %v295, %v141
    %v298 = vadd.f32 %v292, %v296
    %v299 = vadd.f32 %v293, %v297
    %s300 = sld [smem:[#allocation11 + $0x2]]
    %v301 = vstv %s300
    %v302 = vmul.f32 %v301, %v158
    %v303 = vmul.f32 %v301, %v159
    %v304 = vadd.f32 %v298, %v302
    %v305 = vadd.f32 %v299, %v303
    %s306 = sld [smem:[#allocation11 + $0x3]]
    %v307 = vstv %s306
    %v308 = vmul.f32 %v307, %v176
    %v309 = vmul.f32 %v307, %v177
    %v310 = vadd.f32 %v304, %v308
    %v311 = vadd.f32 %v305, %v309
    %s312 = sld [smem:[#allocation11 + $0x4]]
    %v313 = vstv %s312
    %v314 = vmul.f32 %v313, %v194
    %v315 = vmul.f32 %v313, %v195
    %v316 = vadd.f32 %v310, %v314
    %v317 = vadd.f32 %v311, %v315
    %s318 = sld [smem:[#allocation11 + $0x5]]
    %v319 = vstv %s318
    %v320 = vmul.f32 %v319, %v212
    %v321 = vmul.f32 %v319, %v213
    %v322 = vadd.f32 %v316, %v320
    %v323 = vadd.f32 %v317, %v321
    %s324 = sld [smem:[#allocation11 + $0x6]]
    %v325 = vstv %s324
    %v326 = vmul.f32 %v325, %v230
    %v327 = vmul.f32 %v325, %v231
    %v328 = vadd.f32 %v322, %v326
    %v329 = vadd.f32 %v323, %v327
    %s330 = sld [smem:[#allocation11 + $0x7]]
    %v331 = vstv %s330
    %v332 = vmul.f32 %v331, %v248
    %v333 = vmul.f32 %v331, %v249
    %v334 = vadd.f32 %v328, %v332
    %v335 = vadd.f32 %v329, %v333
    %s336 = sld [smem:[#allocation11 + $0x8]]
    %v337 = vstv %s336
    %v338 = vmul.f32 %v337, %v266
    %v339 = vmul.f32 %v337, %v267
    %v340 = vadd.f32 %v334, %v338
    %v341 = vadd.f32 %v335, %v339
    %s342 = sld [smem:[#allocation11 + $0x9]]
    %v343 = vstv %s342
    %v344 = vmul.f32 %v343, %v284
    %v345 = vmul.f32 %v343, %v285
    %v346 = vadd.f32 %v340, %v344
    %v347 = vadd.f32 %v341, %v345
    %v348 = vsub.f32 0.0, %v346
    %v349 = vsub.f32 0.0, %v347
    %v350 = vmul.f32 %v348, 1.442695
    %v351 = vpow.pop %v350
    %v352 = vmul.f32 %v349, 1.442695
    %v353 = vpow.pop %v352
    %v354 = vadd.f32 %v351, 1.0
    %v355 = vadd.f32 %v353, 1.0
    %v356 = vrcp.pop %v354
    %v357 = vrcp.pop %v355
    %s358 = sld [smem:[#allocation12 + $0x1]]
    %s359 = sld [smem:[#allocation11 + $0x80]]
    %v360 = vstv %s359
    %v361 = vmul.f32 %v360, %v122
    %v362 = vmul.f32 %v360, %v123
    %v363 = vstv %s358
    %v364 = vadd.f32 %v363, %v361
    %v365 = vadd.f32 %v363, %v362
    %s366 = sld [smem:[#allocation11 + $0x81]]
    %v367 = vstv %s366
    %v368 = vmul.f32 %v367, %v140
    %v369 = vmul.f32 %v367, %v141
    %v370 = vadd.f32 %v364, %v368
    %v371 = vadd.f32 %v365, %v369
    %s372 = sld [smem:[#allocation11 + $0x82]]
    %v373 = vstv %s372
    %v374 = vmul.f32 %v373, %v158
    %v375 = vmul.f32 %v373, %v159
    %v376 = vadd.f32 %v370, %v374
    %v377 = vadd.f32 %v371, %v375
    %s378 = sld [smem:[#allocation11 + $0x83]]
    %v379 = vstv %s378
    %v380 = vmul.f32 %v379, %v176
    %v381 = vmul.f32 %v379, %v177
    %v382 = vadd.f32 %v376, %v380
    %v383 = vadd.f32 %v377, %v381
    %s384 = sld [smem:[#allocation11 + $0x84]]
    %v385 = vstv %s384
    %v386 = vmul.f32 %v385, %v194
    %v387 = vmul.f32 %v385, %v195
    %v388 = vadd.f32 %v382, %v386
    %v389 = vadd.f32 %v383, %v387
    %s390 = sld [smem:[#allocation11 + $0x85]]
    %v391 = vstv %s390
    %v392 = vmul.f32 %v391, %v212
    %v393 = vmul.f32 %v391, %v213
    %v394 = vadd.f32 %v388, %v392
    %v395 = vadd.f32 %v389, %v393
    %s396 = sld [smem:[#allocation11 + $0x86]]
    %v397 = vstv %s396
    %v398 = vmul.f32 %v397, %v230
    %v399 = vmul.f32 %v397, %v231
    %v400 = vadd.f32 %v394, %v398
    %v401 = vadd.f32 %v395, %v399
    %s402 = sld [smem:[#allocation11 + $0x87]]
    %v403 = vstv %s402
    %v404 = vmul.f32 %v403, %v248
    %v405 = vmul.f32 %v403, %v249
    %v406 = vadd.f32 %v400, %v404
    %v407 = vadd.f32 %v401, %v405
    %s408 = sld [smem:[#allocation11 + $0x88]]
    %v409 = vstv %s408
    %v410 = vmul.f32 %v409, %v266
    %v411 = vmul.f32 %v409, %v267
    %v412 = vadd.f32 %v406, %v410
    %v413 = vadd.f32 %v407, %v411
    %s414 = sld [smem:[#allocation11 + $0x89]]
    %v415 = vstv %s414
    %v416 = vmul.f32 %v415, %v284
    %v417 = vmul.f32 %v415, %v285
    %v418 = vadd.f32 %v412, %v416
    %v419 = vadd.f32 %v413, %v417
    %v420 = vsub.f32 0.0, %v418
    %v421 = vsub.f32 0.0, %v419
    %v422 = vmul.f32 %v420, 1.442695
    %v423 = vpow.pop %v422
    %v424 = vmul.f32 %v421, 1.442695
    %v425 = vpow.pop %v424
    %v426 = vadd.f32 %v423, 1.0
    %v427 = vadd.f32 %v425, 1.0
    %v428 = vrcp.pop %v426
    %v429 = vrcp.pop %v427
    %s430 = sld [smem:[#allocation12 + $0x2]]
    %s431 = sld [smem:[#allocation11 + $0x100]]
    %v432 = vstv %s431
    %v433 = vmul.f32 %v432, %v122
    %v434 = vmul.f32 %v432, %v123
    %v435 = vstv %s430
    %v436 = vadd.f32 %v435, %v433
    %v437 = vadd.f32 %v435, %v434
    %s438 = sld [smem:[#allocation11 + $0x101]]
    %v439 = vstv %s438
    %v440 = vmul.f32 %v439, %v140
    %v441 = vmul.f32 %v439, %v141
    %v442 = vadd.f32 %v436, %v440
    %v443 = vadd.f32 %v437, %v441
    %s444 = sld [smem:[#allocation11 + $0x102]]
    %v445 = vstv %s444
    %v446 = vmul.f32 %v445, %v158
    %v447 = vmul.f32 %v445, %v159
    %v448 = vadd.f32 %v442, %v446
    %v449 = vadd.f32 %v443, %v447
    %s450 = sld [smem:[#allocation11 + $0x103]]
    %v451 = vstv %s450
    %v452 = vmul.f32 %v451, %v176
    %v453 = vmul.f32 %v451, %v177
    %v454 = vadd.f32 %v448, %v452
    %v455 = vadd.f32 %v449, %v453
    %s456 = sld [smem:[#allocation11 + $0x104]]
    %v457 = vstv %s456
    %v458 = vmul.f32 %v457, %v194
    %v459 = vmul.f32 %v457, %v195
    %v460 = vadd.f32 %v454, %v458
    %v461 = vadd.f32 %v455, %v459
    %s462 = sld [smem:[#allocation11 + $0x105]]
    %v463 = vstv %s462
    %v464 = vmul.f32 %v463, %v212
    %v465 = vmul.f32 %v463, %v213
    %v466 = vadd.f32 %v460, %v464
    %v467 = vadd.f32 %v461, %v465
    %s468 = sld [smem:[#allocation11 + $0x106]]
    %v469 = vstv %s468
    %v470 = vmul.f32 %v469, %v230
    %v471 = vmul.f32 %v469, %v231
    %v472 = vadd.f32 %v466, %v470
    %v473 = vadd.f32 %v467, %v471
    %s474 = sld [smem:[#allocation11 + $0x107]]
    %v475 = vstv %s474
    %v476 = vmul.f32 %v475, %v248
    %v477 = vmul.f32 %v475, %v249
    %v478 = vadd.f32 %v472, %v476
    %v479 = vadd.f32 %v473, %v477
    %s480 = sld [smem:[#allocation11 + $0x108]]
    %v481 = vstv %s480
    %v482 = vmul.f32 %v481, %v266
    %v483 = vmul.f32 %v481, %v267
    %v484 = vadd.f32 %v478, %v482
    %v485 = vadd.f32 %v479, %v483
    %s486 = sld [smem:[#allocation11 + $0x109]]
    %v487 = vstv %s486
    %v488 = vmul.f32 %v487, %v284
    %v489 = vmul.f32 %v487, %v285
    %v490 = vadd.f32 %v484, %v488
    %v491 = vadd.f32 %v485, %v489
    %v492 = vsub.f32 0.0, %v490
    %v493 = vsub.f32 0.0, %v491
    %v494 = vmul.f32 %v492, 1.442695
    %v495 = vpow.pop %v494
    %v496 = vmul.f32 %v493, 1.442695
    %v497 = vpow.pop %v496
    %v498 = vadd.f32 %v495, 1.0
    %v499 = vadd.f32 %v497, 1.0
    %v500 = vrcp.pop %v498
    %v501 = vrcp.pop %v499
    %s502 = sld [smem:[#allocation12 + $0x3]]
    %s503 = sld [smem:[#allocation11 + $0x180]]
    %v504 = vstv %s503
    %v505 = vmul.f32 %v504, %v122
    %v506 = vmul.f32 %v504, %v123
    %v507 = vstv %s502
    %v508 = vadd.f32 %v507, %v505
    %v509 = vadd.f32 %v507, %v506
    %s510 = sld [smem:[#allocation11 + $0x181]]
    %v511 = vstv %s510
    %v512 = vmul.f32 %v511, %v140
    %v513 = vmul.f32 %v511, %v141
    %v514 = vadd.f32 %v508, %v512
    %v515 = vadd.f32 %v509, %v513
    %s516 = sld [smem:[#allocation11 + $0x182]]
    %v517 = vstv %s516
    %v518 = vmul.f32 %v517, %v158
    %v519 = vmul.f32 %v517, %v159
    %v520 = vadd.f32 %v514, %v518
    %v521 = vadd.f32 %v515, %v519
    %s522 = sld [smem:[#allocation11 + $0x183]]
    %v523 = vstv %s522
    %v524 = vmul.f32 %v523, %v176
    %v525 = vmul.f32 %v523, %v177
    %v526 = vadd.f32 %v520, %v524
    %v527 = vadd.f32 %v521, %v525
    %s528 = sld [smem:[#allocation11 + $0x184]]
    %v529 = vstv %s528
    %v530 = vmul.f32 %v529, %v194
    %v531 = vmul.f32 %v529, %v195
    %v532 = vadd.f32 %v526, %v530
    %v533 = vadd.f32 %v527, %v531
    %s534 = sld [smem:[#allocation11 + $0x185]]
    %v535 = vstv %s534
    %v536 = vmul.f32 %v535, %v212
    %v537 = vmul.f32 %v535, %v213
    %v538 = vadd.f32 %v532, %v536
    %v539 = vadd.f32 %v533, %v537
    %s540 = sld [smem:[#allocation11 + $0x186]]
    %v541 = vstv %s540
    %v542 = vmul.f32 %v541, %v230
    %v543 = vmul.f32 %v541, %v231
    %v544 = vadd.f32 %v538, %v542
    %v545 = vadd.f32 %v539, %v543
    %s546 = sld [smem:[#allocation11 + $0x187]]
    %v547 = vstv %s546
    %v548 = vmul.f32 %v547, %v248
    %v549 = vmul.f32 %v547, %v249
    %v550 = vadd.f32 %v544, %v548
    %v551 = vadd.f32 %v545, %v549
    %s552 = sld [smem:[#allocation11 + $0x188]]
    %v553 = vstv %s552
    %v554 = vmul.f32 %v553, %v266
    %v555 = vmul.f32 %v553, %v267
    %v556 = vadd.f32 %v550, %v554
    %v557 = vadd.f32 %v551, %v555
    %s558 = sld [smem:[#allocation11 + $0x189]]
    %v559 = vstv %s558
    %v560 = vmul.f32 %v559, %v284
    %v561 = vmul.f32 %v559, %v285
    %v562 = vadd.f32 %v556, %v560
    %v563 = vadd.f32 %v557, %v561
    %v564 = vsub.f32 0.0, %v562
    %v565 = vsub.f32 0.0, %v563
    %v566 = vmul.f32 %v564, 1.442695
    %v567 = vpow.pop %v566
    %v568 = vmul.f32 %v565, 1.442695
    %v569 = vpow.pop %v568
    %v570 = vadd.f32 %v567, 1.0
    %v571 = vadd.f32 %v569, 1.0
    %v572 = vrcp.pop %v570
    %v573 = vrcp.pop %v571
    %s574 = sld [smem:[#allocation12 + $0x4]]
    %s575 = sld [smem:[#allocation11 + $0x200]]
    %v576 = vstv %s575
    %v577 = vmul.f32 %v576, %v122
    %v578 = vmul.f32 %v576, %v123
    %v579 = vstv %s574
    %v580 = vadd.f32 %v579, %v577
    %v581 = vadd.f32 %v579, %v578
    %s582 = sld [smem:[#allocation11 + $0x201]]
    %v583 = vstv %s582
    %v584 = vmul.f32 %v583, %v140
    %v585 = vmul.f32 %v583, %v141
    %v586 = vadd.f32 %v580, %v584
    %v587 = vadd.f32 %v581, %v585
    %s588 = sld [smem:[#allocation11 + $0x202]]
    %v589 = vstv %s588
    %v590 = vmul.f32 %v589, %v158
    %v591 = vmul.f32 %v589, %v159
    %v592 = vadd.f32 %v586, %v590
    %v593 = vadd.f32 %v587, %v591
    %s594 = sld [smem:[#allocation11 + $0x203]]
    %v595 = vstv %s594
    %v596 = vmul.f32 %v595, %v176
    %v597 = vmul.f32 %v595, %v177
    %v598 = vadd.f32 %v592, %v596
    %v599 = vadd.f32 %v593, %v597
    %s600 = sld [smem:[#allocation11 + $0x204]]
    %v601 = vstv %s600
    %v602 = vmul.f32 %v601, %v194
    %v603 = vmul.f32 %v601, %v195
    %v604 = vadd.f32 %v598, %v602
    %v605 = vadd.f32 %v599, %v603
    %s606 = sld [smem:[#allocation11 + $0x205]]
    %v607 = vstv %s606
    %v608 = vmul.f32 %v607, %v212
    %v609 = vmul.f32 %v607, %v213
    %v610 = vadd.f32 %v604, %v608
    %v611 = vadd.f32 %v605, %v609
    %s612 = sld [smem:[#allocation11 + $0x206]]
    %v613 = vstv %s612
    %v614 = vmul.f32 %v613, %v230
    %v615 = vmul.f32 %v613, %v231
    %v616 = vadd.f32 %v610, %v614
    %v617 = vadd.f32 %v611, %v615
    %s618 = sld [smem:[#allocation11 + $0x207]]
    %v619 = vstv %s618
    %v620 = vmul.f32 %v619, %v248
    %v621 = vmul.f32 %v619, %v249
    %v622 = vadd.f32 %v616, %v620
    %v623 = vadd.f32 %v617, %v621
    %s624 = sld [smem:[#allocation11 + $0x208]]
    %v625 = vstv %s624
    %v626 = vmul.f32 %v625, %v266
    %v627 = vmul.f32 %v625, %v267
    %v628 = vadd.f32 %v622, %v626
    %v629 = vadd.f32 %v623, %v627
    %s630 = sld [smem:[#allocation11 + $0x209]]
    %v631 = vstv %s630
    %v632 = vmul.f32 %v631, %v284
    %v633 = vmul.f32 %v631, %v285
    %v634 = vadd.f32 %v628, %v632
    %v635 = vadd.f32 %v629, %v633
    %v636 = vsub.f32 0.0, %v634
    %v637 = vsub.f32 0.0, %v635
    %v638 = vmul.f32 %v636, 1.442695
    %v639 = vpow.pop %v638
    %v640 = vmul.f32 %v637, 1.442695
    %v641 = vpow.pop %v640
    %v642 = vadd.f32 %v639, 1.0
    %v643 = vadd.f32 %v641, 1.0
    %v644 = vrcp.pop %v642
    %v645 = vrcp.pop %v643
    %s646 = sld [smem:[#allocation12 + $0x5]]
    %s647 = sld [smem:[#allocation11 + $0x280]]
    %v648 = vstv %s647
    %v649 = vmul.f32 %v648, %v122
    %v650 = vmul.f32 %v648, %v123
    %v651 = vstv %s646
    %v652 = vadd.f32 %v651, %v649
    %v653 = vadd.f32 %v651, %v650
    %s654 = sld [smem:[#allocation11 + $0x281]]
    %v655 = vstv %s654
    %v656 = vmul.f32 %v655, %v140
    %v657 = vmul.f32 %v655, %v141
    %v658 = vadd.f32 %v652, %v656
    %v659 = vadd.f32 %v653, %v657
    %s660 = sld [smem:[#allocation11 + $0x282]]
    %v661 = vstv %s660
    %v662 = vmul.f32 %v661, %v158
    %v663 = vmul.f32 %v661, %v159
    %v664 = vadd.f32 %v658, %v662
    %v665 = vadd.f32 %v659, %v663
    %s666 = sld [smem:[#allocation11 + $0x283]]
    %v667 = vstv %s666
    %v668 = vmul.f32 %v667, %v176
    %v669 = vmul.f32 %v667, %v177
    %v670 = vadd.f32 %v664, %v668
    %v671 = vadd.f32 %v665, %v669
    %s672 = sld [smem:[#allocation11 + $0x284]]
    %v673 = vstv %s672
    %v674 = vmul.f32 %v673, %v194
    %v675 = vmul.f32 %v673, %v195
    %v676 = vadd.f32 %v670, %v674
    %v677 = vadd.f32 %v671, %v675
    %s678 = sld [smem:[#allocation11 + $0x285]]
    %v679 = vstv %s678
    %v680 = vmul.f32 %v679, %v212
    %v681 = vmul.f32 %v679, %v213
    %v682 = vadd.f32 %v676, %v680
    %v683 = vadd.f32 %v677, %v681
    %s684 = sld [smem:[#allocation11 + $0x286]]
    %v685 = vstv %s684
    %v686 = vmul.f32 %v685, %v230
    %v687 = vmul.f32 %v685, %v231
    %v688 = vadd.f32 %v682, %v686
    %v689 = vadd.f32 %v683, %v687
    %s690 = sld [smem:[#allocation11 + $0x287]]
    %v691 = vstv %s690
    %v692 = vmul.f32 %v691, %v248
    %v693 = vmul.f32 %v691, %v249
    %v694 = vadd.f32 %v688, %v692
    %v695 = vadd.f32 %v689, %v693
    %s696 = sld [smem:[#allocation11 + $0x288]]
    %v697 = vstv %s696
    %v698 = vmul.f32 %v697, %v266
    %v699 = vmul.f32 %v697, %v267
    %v700 = vadd.f32 %v694, %v698
    %v701 = vadd.f32 %v695, %v699
    %s702 = sld [smem:[#allocation11 + $0x289]]
    %v703 = vstv %s702
    %v704 = vmul.f32 %v703, %v284
    %v705 = vmul.f32 %v703, %v285
    %v706 = vadd.f32 %v700, %v704
    %v707 = vadd.f32 %v701, %v705
    %v708 = vsub.f32 0.0, %v706
    %v709 = vsub.f32 0.0, %v707
    %v710 = vmul.f32 %v708, 1.442695
    %v711 = vpow.pop %v710
    %v712 = vmul.f32 %v709, 1.442695
    %v713 = vpow.pop %v712
    %v714 = vadd.f32 %v711, 1.0
    %v715 = vadd.f32 %v713, 1.0
    %v716 = vrcp.pop %v714
    %v717 = vrcp.pop %v715
    %s718 = sld [smem:[#allocation12 + $0x6]]
    %s719 = sld [smem:[#allocation11 + $0x300]]
    %v720 = vstv %s719
    %v721 = vmul.f32 %v720, %v122
    %v722 = vmul.f32 %v720, %v123
    %v723 = vstv %s718
    %v724 = vadd.f32 %v723, %v721
    %v725 = vadd.f32 %v723, %v722
    %s726 = sld [smem:[#allocation11 + $0x301]]
    %v727 = vstv %s726
    %v728 = vmul.f32 %v727, %v140
    %v729 = vmul.f32 %v727, %v141
    %v730 = vadd.f32 %v724, %v728
    %v731 = vadd.f32 %v725, %v729
    %s732 = sld [smem:[#allocation11 + $0x302]]
    %v733 = vstv %s732
    %v734 = vmul.f32 %v733, %v158
    %v735 = vmul.f32 %v733, %v159
    %v736 = vadd.f32 %v730, %v734
    %v737 = vadd.f32 %v731, %v735
    %s738 = sld [smem:[#allocation11 + $0x303]]
    %v739 = vstv %s738
    %v740 = vmul.f32 %v739, %v176
    %v741 = vmul.f32 %v739, %v177
    %v742 = vadd.f32 %v736, %v740
    %v743 = vadd.f32 %v737, %v741
    %s744 = sld [smem:[#allocation11 + $0x304]]
    %v745 = vstv %s744
    %v746 = vmul.f32 %v745, %v194
    %v747 = vmul.f32 %v745, %v195
    %v748 = vadd.f32 %v742, %v746
    %v749 = vadd.f32 %v743, %v747
    %s750 = sld [smem:[#allocation11 + $0x305]]
    %v751 = vstv %s750
    %v752 = vmul.f32 %v751, %v212
    %v753 = vmul.f32 %v751, %v213
    %v754 = vadd.f32 %v748, %v752
    %v755 = vadd.f32 %v749, %v753
    %s756 = sld [smem:[#allocation11 + $0x306]]
    %v757 = vstv %s756
    %v758 = vmul.f32 %v757, %v230
    %v759 = vmul.f32 %v757, %v231
    %v760 = vadd.f32 %v754, %v758
    %v761 = vadd.f32 %v755, %v759
    %s762 = sld [smem:[#allocation11 + $0x307]]
    %v763 = vstv %s762
    %v764 = vmul.f32 %v763, %v248
    %v765 = vmul.f32 %v763, %v249
    %v766 = vadd.f32 %v760, %v764
    %v767 = vadd.f32 %v761, %v765
    %s768 = sld [smem:[#allocation11 + $0x308]]
    %v769 = vstv %s768
    %v770 = vmul.f32 %v769, %v266
    %v771 = vmul.f32 %v769, %v267
    %v772 = vadd.f32 %v766, %v770
    %v773 = vadd.f32 %v767, %v771
    %s774 = sld [smem:[#allocation11 + $0x309]]
    %v775 = vstv %s774
    %v776 = vmul.f32 %v775, %v284
    %v777 = vmul.f32 %v775, %v285
    %v778 = vadd.f32 %v772, %v776
    %v779 = vadd.f32 %v773, %v777
    %v780 = vsub.f32 0.0, %v778
    %v781 = vsub.f32 0.0, %v779
    %v782 = vmul.f32 %v780, 1.442695
    %v783 = vpow.pop %v782
    %v784 = vmul.f32 %v781, 1.442695
    %v785 = vpow.pop %v784
    %v786 = vadd.f32 %v783, 1.0
    %v787 = vadd.f32 %v785, 1.0
    %v788 = vrcp.pop %v786
    %v789 = vrcp.pop %v787
    %s790 = sld [smem:[#allocation12 + $0x7]]
    %s791 = sld [smem:[#allocation11 + $0x380]]
    %v792 = vstv %s791
    %v793 = vmul.f32 %v792, %v122
    %v794 = vmul.f32 %v792, %v123
    %v795 = vstv %s790
    %v796 = vadd.f32 %v795, %v793
    %v797 = vadd.f32 %v795, %v794
    %s798 = sld [smem:[#allocation11 + $0x381]]
    %v799 = vstv %s798
    %v800 = vmul.f32 %v799, %v140
    %v801 = vmul.f32 %v799, %v141
    %v802 = vadd.f32 %v796, %v800
    %v803 = vadd.f32 %v797, %v801
    %s804 = sld [smem:[#allocation11 + $0x382]]
    %v805 = vstv %s804
    %v806 = vmul.f32 %v805, %v158
    %v807 = vmul.f32 %v805, %v159
    %v808 = vadd.f32 %v802, %v806
    %v809 = vadd.f32 %v803, %v807
    %s810 = sld [smem:[#allocation11 + $0x383]]
    %v811 = vstv %s810
    %v812 = vmul.f32 %v811, %v176
    %v813 = vmul.f32 %v811, %v177
    %v814 = vadd.f32 %v808, %v812
    %v815 = vadd.f32 %v809, %v813
    %s816 = sld [smem:[#allocation11 + $0x384]]
    %v817 = vstv %s816
    %v818 = vmul.f32 %v817, %v194
    %v819 = vmul.f32 %v817, %v195
    %v820 = vadd.f32 %v814, %v818
    %v821 = vadd.f32 %v815, %v819
    %s822 = sld [smem:[#allocation11 + $0x385]]
    %v823 = vstv %s822
    %v824 = vmul.f32 %v823, %v212
    %v825 = vmul.f32 %v823, %v213
    %v826 = vadd.f32 %v820, %v824
    %v827 = vadd.f32 %v821, %v825
    %s828 = sld [smem:[#allocation11 + $0x386]]
    %v829 = vstv %s828
    %v830 = vmul.f32 %v829, %v230
    %v831 = vmul.f32 %v829, %v231
    %v832 = vadd.f32 %v826, %v830
    %v833 = vadd.f32 %v827, %v831
    %s834 = sld [smem:[#allocation11 + $0x387]]
    %v835 = vstv %s834
    %v836 = vmul.f32 %v835, %v248
    %v837 = vmul.f32 %v835, %v249
    %v838 = vadd.f32 %v832, %v836
    %v839 = vadd.f32 %v833, %v837
    %s840 = sld [smem:[#allocation11 + $0x388]]
    %v841 = vstv %s840
    %v842 = vmul.f32 %v841, %v266
    %v843 = vmul.f32 %v841, %v267
    %v844 = vadd.f32 %v838, %v842
    %v845 = vadd.f32 %v839, %v843
    %s846 = sld [smem:[#allocation11 + $0x389]]
    %v847 = vstv %s846
    %v848 = vmul.f32 %v847, %v284
    %v849 = vmul.f32 %v847, %v285
    %v850 = vadd.f32 %v844, %v848
    %v851 = vadd.f32 %v845, %v849
    %v852 = vsub.f32 0.0, %v850
    %v853 = vsub.f32 0.0, %v851
    %v854 = vmul.f32 %v852, 1.442695
    %v855 = vpow.pop %v854
    %v856 = vmul.f32 %v853, 1.442695
    %v857 = vpow.pop %v856
    %v858 = vadd.f32 %v855, 1.0
    %v859 = vadd.f32 %v857, 1.0
    %v860 = vrcp.pop %v858
    %v861 = vrcp.pop %v859
    %s862 = sld [smem:[#allocation12 + $0x8]]
    %s863 = sld [smem:[#allocation11 + $0x400]]
    %v864 = vstv %s863
    %v865 = vmul.f32 %v864, %v122
    %v866 = vmul.f32 %v864, %v123
    %v867 = vstv %s862
    %v868 = vadd.f32 %v867, %v865
    %v869 = vadd.f32 %v867, %v866
    %s870 = sld [smem:[#allocation11 + $0x401]]
    %v871 = vstv %s870
    %v872 = vmul.f32 %v871, %v140
    %v873 = vmul.f32 %v871, %v141
    %v874 = vadd.f32 %v868, %v872
    %v875 = vadd.f32 %v869, %v873
    %s876 = sld [smem:[#allocation11 + $0x402]]
    %v877 = vstv %s876
    %v878 = vmul.f32 %v877, %v158
    %v879 = vmul.f32 %v877, %v159
    %v880 = vadd.f32 %v874, %v878
    %v881 = vadd.f32 %v875, %v879
    %s882 = sld [smem:[#allocation11 + $0x403]]
    %v883 = vstv %s882
    %v884 = vmul.f32 %v883, %v176
    %v885 = vmul.f32 %v883, %v177
    %v886 = vadd.f32 %v880, %v884
    %v887 = vadd.f32 %v881, %v885
    %s888 = sld [smem:[#allocation11 + $0x404]]
    %v889 = vstv %s888
    %v890 = vmul.f32 %v889, %v194
    %v891 = vmul.f32 %v889, %v195
    %v892 = vadd.f32 %v886, %v890
    %v893 = vadd.f32 %v887, %v891
    %s894 = sld [smem:[#allocation11 + $0x405]]
    %v895 = vstv %s894
    %v896 = vmul.f32 %v895, %v212
    %v897 = vmul.f32 %v895, %v213
    %v898 = vadd.f32 %v892, %v896
    %v899 = vadd.f32 %v893, %v897
    %s900 = sld [smem:[#allocation11 + $0x406]]
    %v901 = vstv %s900
    %v902 = vmul.f32 %v901, %v230
    %v903 = vmul.f32 %v901, %v231
    %v904 = vadd.f32 %v898, %v902
    %v905 = vadd.f32 %v899, %v903
    %s906 = sld [smem:[#allocation11 + $0x407]]
    %v907 = vstv %s906
    %v908 = vmul.f32 %v907, %v248
    %v909 = vmul.f32 %v907, %v249
    %v910 = vadd.f32 %v904, %v908
    %v911 = vadd.f32 %v905, %v909
    %s912 = sld [smem:[#allocation11 + $0x408]]
    %v913 = vstv %s912
    %v914 = vmul.f32 %v913, %v266
    %v915 = vmul.f32 %v913, %v267
    %v916 = vadd.f32 %v910, %v914
    %v917 = vadd.f32 %v911, %v915
    %s918 = sld [smem:[#allocation11 + $0x409]]
    %v919 = vstv %s918
    %v920 = vmul.f32 %v919, %v284
    %v921 = vmul.f32 %v919, %v285
    %v922 = vadd.f32 %v916, %v920
    %v923 = vadd.f32 %v917, %v921
    %v924 = vsub.f32 0.0, %v922
    %v925 = vsub.f32 0.0, %v923
    %v926 = vmul.f32 %v924, 1.442695
    %v927 = vpow.pop %v926
    %v928 = vmul.f32 %v925, 1.442695
    %v929 = vpow.pop %v928
    %v930 = vadd.f32 %v927, 1.0
    %v931 = vadd.f32 %v929, 1.0
    %v932 = vrcp.pop %v930
    %v933 = vrcp.pop %v931
    %s934 = sld [smem:[#allocation12 + $0x9]]
    %s935 = sld [smem:[#allocation11 + $0x480]]
    %v936 = vstv %s935
    %v937 = vmul.f32 %v936, %v122
    %v938 = vmul.f32 %v936, %v123
    %v939 = vstv %s934
    %v940 = vadd.f32 %v939, %v937
    %v941 = vadd.f32 %v939, %v938
    %s942 = sld [smem:[#allocation11 + $0x481]]
    %v943 = vstv %s942
    %v944 = vmul.f32 %v943, %v140
    %v945 = vmul.f32 %v943, %v141
    %v946 = vadd.f32 %v940, %v944
    %v947 = vadd.f32 %v941, %v945
    %s948 = sld [smem:[#allocation11 + $0x482]]
    %v949 = vstv %s948
    %v950 = vmul.f32 %v949, %v158
    %v951 = vmul.f32 %v949, %v159
    %v952 = vadd.f32 %v946, %v950
    %v953 = vadd.f32 %v947, %v951
    %s954 = sld [smem:[#allocation11 + $0x483]]
    %v955 = vstv %s954
    %v956 = vmul.f32 %v955, %v176
    %v957 = vmul.f32 %v955, %v177
    %v958 = vadd.f32 %v952, %v956
    %v959 = vadd.f32 %v953, %v957
    %s960 = sld [smem:[#allocation11 + $0x484]]
    %v961 = vstv %s960
    %v962 = vmul.f32 %v961, %v194
    %v963 = vmul.f32 %v961, %v195
    %v964 = vadd.f32 %v958, %v962
    %v965 = vadd.f32 %v959, %v963
    %s966 = sld [smem:[#allocation11 + $0x485]]
    %v967 = vstv %s966
    %v968 = vmul.f32 %v967, %v212
    %v969 = vmul.f32 %v967, %v213
    %v970 = vadd.f32 %v964, %v968
    %v971 = vadd.f32 %v965, %v969
    %s972 = sld [smem:[#allocation11 + $0x486]]
    %v973 = vstv %s972
    %v974 = vmul.f32 %v973, %v230
    %v975 = vmul.f32 %v973, %v231
    %v976 = vadd.f32 %v970, %v974
    %v977 = vadd.f32 %v971, %v975
    %s978 = sld [smem:[#allocation11 + $0x487]]
    %v979 = vstv %s978
    %v980 = vmul.f32 %v979, %v248
    %v981 = vmul.f32 %v979, %v249
    %v982 = vadd.f32 %v976, %v980
    %v983 = vadd.f32 %v977, %v981
    %s984 = sld [smem:[#allocation11 + $0x488]]
    %v985 = vstv %s984
    %v986 = vmul.f32 %v985, %v266
    %v987 = vmul.f32 %v985, %v267
    %v988 = vadd.f32 %v982, %v986
    %v989 = vadd.f32 %v983, %v987
    %s990 = sld [smem:[#allocation11 + $0x489]]
    %v991 = vstv %s990
    %v992 = vmul.f32 %v991, %v284
    %v993 = vmul.f32 %v991, %v285
    %v994 = vadd.f32 %v988, %v992
    %v995 = vadd.f32 %v989, %v993
    %v996 = vsub.f32 0.0, %v994
    %v997 = vsub.f32 0.0, %v995
    %v998 = vmul.f32 %v996, 1.442695
    %v999 = vpow.pop %v998
    %v1000 = vmul.f32 %v997, 1.442695
    %v1001 = vpow.pop %v1000
    %v1002 = vadd.f32 %v999, 1.0
    %v1003 = vadd.f32 %v1001, 1.0
    %v1004 = vrcp.pop %v1002
    %v1005 = vrcp.pop %v1003
    %s1006 = sld [smem:[#allocation2]]
    %s1007 = sld [smem:[#allocation13]]
    %v1008 = vstv %s1007
    %v1009 = vmul.f32 %v1008, %v356
    %v1010 = vmul.f32 %v1008, %v357
    %v1011 = vstv %s1006
    %v1012 = vadd.f32 %v1011, %v1009
    %v1013 = vadd.f32 %v1011, %v1010
    %s1014 = sld [smem:[#allocation13 + $0x1]]
    %v1015 = vstv %s1014
    %v1016 = vmul.f32 %v1015, %v428
    %v1017 = vmul.f32 %v1015, %v429
    %v1018 = vadd.f32 %v1012, %v1016
    %v1019 = vadd.f32 %v1013, %v1017
    %s1020 = sld [smem:[#allocation13 + $0x2]]
    %v1021 = vstv %s1020
    %v1022 = vmul.f32 %v1021, %v500
    %v1023 = vmul.f32 %v1021, %v501
    %v1024 = vadd.f32 %v1018, %v1022
    %v1025 = vadd.f32 %v1019, %v1023
    %s1026 = sld [smem:[#allocation13 + $0x3]]
    %v1027 = vstv %s1026
    %v1028 = vmul.f32 %v1027, %v572
    %v1029 = vmul.f32 %v1027, %v573
    %v1030 = vadd.f32 %v1024, %v1028
    %v1031 = vadd.f32 %v1025, %v1029
    %s1032 = sld [smem:[#allocation13 + $0x4]]
    %v1033 = vstv %s1032
    %v1034 = vmul.f32 %v1033, %v644
    %v1035 = vmul.f32 %v1033, %v645
    %v1036 = vadd.f32 %v1030, %v1034
    %v1037 = vadd.f32 %v1031, %v1035
    %s1038 = sld [smem:[#allocation13 + $0x5]]
    %v1039 = vstv %s1038
    %v1040 = vmul.f32 %v1039, %v716
    %v1041 = vmul.f32 %v1039, %v717
    %v1042 = vadd.f32 %v1036, %v1040
    %v1043 = vadd.f32 %v1037, %v1041
    %s1044 = sld [smem:[#allocation13 + $0x6]]
    %v1045 = vstv %s1044
    %v1046 = vmul.f32 %v1045, %v788
    %v1047 = vmul.f32 %v1045, %v789
    %v1048 = vadd.f32 %v1042, %v1046
    %v1049 = vadd.f32 %v1043, %v1047
    %s1050 = sld [smem:[#allocation13 + $0x7]]
    %v1051 = vstv %s1050
    %v1052 = vmul.f32 %v1051, %v860
    %v1053 = vmul.f32 %v1051, %v861
    %v1054 = vadd.f32 %v1048, %v1052
    %v1055 = vadd.f32 %v1049, %v1053
    %s1056 = sld [smem:[#allocation13 + $0x8]]
    %v1057 = vstv %s1056
    %v1058 = vmul.f32 %v1057, %v932
    %v1059 = vmul.f32 %v1057, %v933
    %v1060 = vadd.f32 %v1054, %v1058
    %v1061 = vadd.f32 %v1055, %v1059
    %s1062 = sld [smem:[#allocation13 + $0x9]]
    %v1063 = vstv %s1062
    %v1064 = vmul.f32 %v1063, %v1004
    %v1065 = vmul.f32 %v1063, %v1005
    %v1066 = vadd.f32 %v1060, %v1064
    %v1067 = vadd.f32 %v1061, %v1065
    %1068 = vst [vmem:[#allocation15] sm:$0xff] %v1066
    %1069 = vst [vmem:[#allocation15 + $0x8] sm:$0xff] %v1067
    // Predicated region
    $region54: #{tpu_custom_call.1} parent=1 // pred_check
      _
    $region55: #{tpu_custom_call.1} parent=1 // pred_check_branch
      %1071 = sbr.rel (0) target = $region57
    $region56: #{tpu_custom_call.1} parent=1 // pred_region
      %1073 = vsyncadd [#allocation5], 0
      %s1075 = sshll.u32 [#allocation15], 4
      %s1076 = int_to_ptr.vmem [resolvable:$true] %s1075
      %s1077 = sshll.u32 %s7, 4
      %s1078 = int_to_ptr.hbm [resolvable:$true] %s1077
      %1080 = dma.vmem_to_hbm [thread:$0]  %s1076, 256, %s1078, [#allocation5]
    $region57: #{tpu_custom_call.1} parent=1 // pred_fallthru
      _
    // Predicated region
    $region58: #{tpu_custom_call.1} parent=1 // pred_check
      _
    $region59: #{tpu_custom_call.1} parent=1 // pred_check_branch
      %1082 = sbr.rel (0) target = $region61
    $region60: #{tpu_custom_call.1} parent=1 // pred_region
      %1084 = dma.done [#allocation5], 256
    $region61: #{tpu_custom_call.1} parent=1 // pred_fallthru
      _
    %1085 = vsyncpa [#allocation4], 1
    %1086 = vsyncpa [#allocation5], 1
    %1087 = vsyncpa [#allocation6], 1
    %1088 = vsyncpa [#allocation7], 1
    %1089 = vsyncpa [#allocation10], 1
    %1090 = vsyncpa [#allocation14], 1

</llo_original>
